<compile_context>
chip_gen: v7x
topology: tpu7x:2x2x1
jax: 0.10.0
libtpu: 0.0.40
codegen_flags: <defaults>
</compile_context>

<pallas_src>
import functools

import jax
import jax.numpy as jnp
from jax.experimental import pallas as pl
from jax.experimental.pallas import tpu as pltpu


def _cdiv(a, b):
    return -(-a // b)


def _round_up(x, m):
    return (x + m - 1) // m * m


def _matrixnet_kernel(x_ref, w1_ref, b1_ref, w2_ref, b2_ref, w3_ref, b3_ref,
                      o_ref, *, n):
    """Transposed-layout forward: features on sublanes, batch on lanes.

    x_ref : (F, tb)          input tile (x^T)
    w*_ref: (out, in)        PyTorch-layout weights (fc3 pre-split per group)
    b*_ref: (out, 1)         biases as column vectors
    o_ref : (n, n, tb)       o_ref[g, j, b] = softmax_j(fc3(x)[b, g*n + j])
    """
    prec = jax.lax.Precision.HIGHEST  # K <= 9, so extra passes are ~free

    xT = x_ref[...]                                              # (F, tb)
    # fc1 -> relu
    h = jnp.dot(w1_ref[...], xT,
                preferred_element_type=jnp.float32, precision=prec)
    h = jnp.maximum(h + b1_ref[...], 0.0)                        # (n*n, tb)
    # fc2 -> relu
    h = jnp.dot(w2_ref[...], h,
                preferred_element_type=jnp.float32, precision=prec)
    h = jnp.maximum(h + b2_ref[...], 0.0)                        # (n*n, tb)

    # fc3 + grouped softmax, one group (= one output row of the n x n matrix)
    # at a time.  Static Python unroll (n == 3).  Per-group max gives the same
    # numerics as the PyTorch reference (shift-invariant, never cross-group).
    for g in range(n):
        logits = jnp.dot(w3_ref[g], h,
                         preferred_element_type=jnp.float32,
                         precision=prec) + b3_ref[g]             # (n, tb)
        m = jnp.max(logits, axis=0, keepdims=True)               # (1, tb) XLU
        e = jnp.exp(logits - m)                                  # EUP
        s = jnp.sum(e, axis=0, keepdims=True)                    # (1, tb)
        r = pl.reciprocal(s, approx=True)                        # EUP vrcp
        r = r * (2.0 - s * r)                                    # Newton step
        o_ref[g] = e * r                                         # (n, tb)


def matrixnet_forward(x, params, n, *, block_b=4096):
    """x: (B, input_shape) f32 -> (B, n, n) f32, softmax over the last axis."""
    w1, b1, w2, b2, w3, b3 = params          # weights (out,in), biases (out,1)
    B, F = x.shape
    nn2 = n * n
    assert w1.shape == (nn2, F) and w3.shape == (nn2, nn2)

    # Pre-split fc3 per softmax group (host/XLA side, once).
    w3g = w3.reshape(n, n, nn2)
    b3g = b3.reshape(n, n, 1)

    # Batch tile on lanes: multiple of 256 (full MXU width on v6e/v7x) and,
    # for large batches, small enough that the grid has >= 2 steps so both
    # v7x TensorCores are engaged.
    tb = max(256, min(block_b, _round_up(_cdiv(B, 2), 256)))
    b_pad = _round_up(B, tb)
    xT = jnp.pad(x.T, ((0, 0), (0, b_pad - B)))                  # (F, b_pad)

    def const_spec(arr):
        # Full-extent block, same block every grid step -> stays VMEM-resident.
        return pl.BlockSpec(arr.shape, lambda i: (0,) * arr.ndim)

    out = pl.pallas_call(
        functools.partial(_matrixnet_kernel, n=n),
        out_shape=jax.ShapeDtypeStruct((n, n, b_pad), jnp.float32),
        grid=(b_pad // tb,),
        in_specs=[
            pl.BlockSpec((F, tb), lambda i: (0, i)),   # x^T, batch-tiled lanes
            const_spec(w1), const_spec(b1),
            const_spec(w2), const_spec(b2),
            const_spec(w3g), const_spec(b3g),
        ],
        out_specs=pl.BlockSpec((n, n, tb), lambda i: (0, 0, i)),
        compiler_params=pltpu.CompilerParams(
            dimension_semantics=("parallel",)),
    )(xT, w1, b1, w2, b2, w3g, b3g)

    # (n, n, b_pad) -> (B, n, n): cheap wrapper-side layout glue.
    return jnp.transpose(out, (2, 0, 1))[:B]


def init_params(key, n, input_shape):
    """Deterministic init mimicking nn.Linear (uniform +/- 1/sqrt(fan_in)).

    Weights are stored in PyTorch layout (out_features, in_features);
    biases as (out_features, 1)."""
    nn2 = n * n
    ks = jax.random.split(key, 6)

    def linear(kw, kb, fan_in, fan_out):
        bound = 1.0 / jnp.sqrt(jnp.float32(fan_in))
        w = jax.random.uniform(kw, (fan_out, fan_in), jnp.float32, -bound, bound)
        b = jax.random.uniform(kb, (fan_out, 1), jnp.float32, -bound, bound)
        return w, b

    w1, b1 = linear(ks[0], ks[1], input_shape, nn2)
    w2, b2 = linear(ks[2], ks[3], nn2, nn2)
    w3, b3 = linear(ks[4], ks[5], nn2, nn2)
    return (w1, b1, w2, b2, w3, b3)


def matrixnet_reference(x, params, n):
    w1, b1, w2, b2, w3, b3 = params
    h = jnp.maximum(x @ w1.T + b1[:, 0], 0.0)
    h = jnp.maximum(h @ w2.T + b2[:, 0], 0.0)
    h = (h @ w3.T + b3[:, 0]).reshape(-1, n, n)
    return jax.nn.softmax(h, axis=2)


if __name__ == "__main__":
    n = 3
    input_shape = 2
    batch = 8

    key = jax.random.PRNGKey(0)
    k_params, k_x = jax.random.split(key)
    params = init_params(k_params, n, input_shape)
    x = jax.random.normal(k_x, (batch, input_shape), jnp.float32)

    out = matrixnet_forward(x, params, n)
    out = jax.block_until_ready(out)

    ref = matrixnet_reference(x, params, n)
    assert out.shape == (batch, n, n)
    assert jnp.allclose(out, ref, atol=2e-5, rtol=2e-5), float(
        jnp.max(jnp.abs(out - ref)))
    # rows of the softmax output must sum to 1
    assert jnp.allclose(out.sum(axis=2), jnp.ones((batch, n)), atol=1e-5)

    print("KERNEL_OK")
</pallas_src>

<mosaic_0001>
module attributes {stable_mosaic.version = 11 : i64} {
  func.func @_matrixnet_kernel(%arg0: i32, %arg1: memref<2x256xf32, #tpu.memory_space<vmem>>, %arg2: memref<9x2xf32, #tpu.memory_space<vmem>>, %arg3: memref<9x1xf32, #tpu.memory_space<vmem>>, %arg4: memref<9x9xf32, #tpu.memory_space<vmem>>, %arg5: memref<9x1xf32, #tpu.memory_space<vmem>>, %arg6: memref<3x3x9xf32, #tpu.memory_space<vmem>>, %arg7: memref<3x3x1xf32, #tpu.memory_space<vmem>>, %arg8: memref<3x3x256xf32, #tpu.memory_space<vmem>>) attributes {dimension_semantics = [#tpu.dimension_semantics<parallel>], iteration_bounds = array<i64: 1>, scalar_prefetch = 0 : i64, scratch_operands = 0 : i64, tpu.core_type = #tpu.core_type<tc>, window_params = [{transform_indices = @transform_0, window_bounds = array<i64: 2, 256>}, {pipeline_mode = #tpu.pipeline_mode<synchronous>, transform_indices = @transform_1, window_bounds = array<i64: 9, 2>}, {pipeline_mode = #tpu.pipeline_mode<synchronous>, transform_indices = @transform_2, window_bounds = array<i64: 9, 1>}, {pipeline_mode = #tpu.pipeline_mode<synchronous>, transform_indices = @transform_3, window_bounds = array<i64: 9, 9>}, {pipeline_mode = #tpu.pipeline_mode<synchronous>, transform_indices = @transform_4, window_bounds = array<i64: 9, 1>}, {pipeline_mode = #tpu.pipeline_mode<synchronous>, transform_indices = @transform_5, window_bounds = array<i64: 3, 3, 9>}, {pipeline_mode = #tpu.pipeline_mode<synchronous>, transform_indices = @transform_6, window_bounds = array<i64: 3, 3, 1>}, {transform_indices = @transform_7, window_bounds = array<i64: 3, 3, 256>}]} {
    %c0 = arith.constant 0 : index
    %c0_0 = arith.constant 0 : index
    %0 = vector.load %arg1[%c0, %c0_0] : memref<2x256xf32, #tpu.memory_space<vmem>>, vector<2x256xf32>
    %c0_1 = arith.constant 0 : index
    %c0_2 = arith.constant 0 : index
    %1 = vector.load %arg2[%c0_1, %c0_2] : memref<9x2xf32, #tpu.memory_space<vmem>>, vector<9x2xf32>
    %cst = arith.constant dense<0.000000e+00> : vector<9x256xf32>
    %2 = tpu.matmul %1, %0, %cst {dimension_numbers = #tpu.dot_dimension_numbers<[1], [0], [0], [1], [0, 0, 1, 1], [], []>, precision = #tpu.contract_precision<fp32>} : vector<9x2xf32>, vector<2x256xf32>, vector<9x256xf32> -> vector<9x256xf32>
    %c0_3 = arith.constant 0 : index
    %c0_4 = arith.constant 0 : index
    %3 = vector.load %arg3[%c0_3, %c0_4] : memref<9x1xf32, #tpu.memory_space<vmem>>, vector<9x1xf32>
    %4 = vector.broadcast %3 : vector<9x1xf32> to vector<9x256xf32>
    %5 = arith.addf %2, %4 : vector<9x256xf32>
    %cst_5 = arith.constant 0.000000e+00 : f32
    %6 = vector.broadcast %cst_5 : f32 to vector<9x256xf32>
    %7 = arith.maximumf %5, %6 : vector<9x256xf32>
    %c0_6 = arith.constant 0 : index
    %c0_7 = arith.constant 0 : index
    %8 = vector.load %arg4[%c0_6, %c0_7] : memref<9x9xf32, #tpu.memory_space<vmem>>, vector<9x9xf32>
    %cst_8 = arith.constant dense<0.000000e+00> : vector<9x256xf32>
    %9 = tpu.matmul %8, %7, %cst_8 {dimension_numbers = #tpu.dot_dimension_numbers<[1], [0], [0], [1], [0, 0, 1, 1], [], []>, precision = #tpu.contract_precision<fp32>} : vector<9x9xf32>, vector<9x256xf32>, vector<9x256xf32> -> vector<9x256xf32>
    %c0_9 = arith.constant 0 : index
    %c0_10 = arith.constant 0 : index
    %10 = vector.load %arg5[%c0_9, %c0_10] : memref<9x1xf32, #tpu.memory_space<vmem>>, vector<9x1xf32>
    %11 = vector.broadcast %10 : vector<9x1xf32> to vector<9x256xf32>
    %12 = arith.addf %9, %11 : vector<9x256xf32>
    %cst_11 = arith.constant 0.000000e+00 : f32
    %13 = vector.broadcast %cst_11 : f32 to vector<9x256xf32>
    %14 = arith.maximumf %12, %13 : vector<9x256xf32>
    %c0_12 = arith.constant 0 : index
    %c0_13 = arith.constant 0 : index
    %c0_14 = arith.constant 0 : index
    %15 = vector.load %arg6[%c0_12, %c0_13, %c0_14] : memref<3x3x9xf32, #tpu.memory_space<vmem>>, vector<1x3x9xf32>
    %16 = vector.shape_cast %15 : vector<1x3x9xf32> to vector<3x9xf32>
    %cst_15 = arith.constant dense<0.000000e+00> : vector<3x256xf32>
    %17 = tpu.matmul %16, %14, %cst_15 {dimension_numbers = #tpu.dot_dimension_numbers<[1], [0], [0], [1], [0, 0, 1, 1], [], []>, precision = #tpu.contract_precision<fp32>} : vector<3x9xf32>, vector<9x256xf32>, vector<3x256xf32> -> vector<3x256xf32>
    %c0_16 = arith.constant 0 : index
    %c0_17 = arith.constant 0 : index
    %c0_18 = arith.constant 0 : index
    %18 = vector.load %arg7[%c0_16, %c0_17, %c0_18] : memref<3x3x1xf32, #tpu.memory_space<vmem>>, vector<1x3x1xf32>
    %19 = vector.shape_cast %18 : vector<1x3x1xf32> to vector<3x1xf32>
    %20 = vector.broadcast %19 : vector<3x1xf32> to vector<3x256xf32>
    %21 = arith.addf %17, %20 : vector<3x256xf32>
    %cst_19 = arith.constant dense<0xFF800000> : vector<256xf32>
    %22 = vector.multi_reduction <maximumf>, %21, %cst_19 [0] : vector<3x256xf32> to vector<256xf32>
    %23 = vector.shape_cast %22 : vector<256xf32> to vector<1x256xf32>
    %24 = vector.broadcast %23 : vector<1x256xf32> to vector<3x256xf32>
    %25 = arith.subf %21, %24 : vector<3x256xf32>
    %26 = math.exp %25 : vector<3x256xf32>
    %cst_20 = arith.constant dense<0.000000e+00> : vector<256xf32>
    %27 = vector.multi_reduction <add>, %26, %cst_20 [0] : vector<3x256xf32> to vector<256xf32>
    %28 = vector.shape_cast %27 : vector<256xf32> to vector<1x256xf32>
    %29 = tpu.reciprocal %28 {approx = true} : vector<1x256xf32> -> vector<1x256xf32>
    %30 = arith.mulf %28, %29 : vector<1x256xf32>
    %cst_21 = arith.constant 2.000000e+00 : f32
    %31 = vector.broadcast %cst_21 : f32 to vector<1x256xf32>
    %32 = arith.subf %31, %30 : vector<1x256xf32>
    %33 = arith.mulf %29, %32 : vector<1x256xf32>
    %34 = vector.broadcast %33 : vector<1x256xf32> to vector<3x256xf32>
    %35 = arith.mulf %26, %34 : vector<3x256xf32>
    %c0_22 = arith.constant 0 : index
    %c0_23 = arith.constant 0 : index
    %c0_24 = arith.constant 0 : index
    %36 = vector.load %arg8[%c0_22, %c0_23, %c0_24] : memref<3x3x256xf32, #tpu.memory_space<vmem>>, vector<1x3x256xf32>
    %37 = vector.shape_cast %36 : vector<1x3x256xf32> to vector<3x256xf32>
    %38 = vector.shape_cast %35 : vector<3x256xf32> to vector<1x3x256xf32>
    tpu.vector_store %arg8[%c0_22, %c0_23, %c0_24], %38 {strides = array<i32>} : memref<3x3x256xf32, #tpu.memory_space<vmem>>, vector<1x3x256xf32>,
    %c1 = arith.constant 1 : index
    %c0_25 = arith.constant 0 : index
    %c0_26 = arith.constant 0 : index
    %39 = vector.load %arg6[%c1, %c0_25, %c0_26] : memref<3x3x9xf32, #tpu.memory_space<vmem>>, vector<1x3x9xf32>
    %40 = vector.shape_cast %39 : vector<1x3x9xf32> to vector<3x9xf32>
    %cst_27 = arith.constant dense<0.000000e+00> : vector<3x256xf32>
    %41 = tpu.matmul %40, %14, %cst_27 {dimension_numbers = #tpu.dot_dimension_numbers<[1], [0], [0], [1], [0, 0, 1, 1], [], []>, precision = #tpu.contract_precision<fp32>} : vector<3x9xf32>, vector<9x256xf32>, vector<3x256xf32> -> vector<3x256xf32>
    %c1_28 = arith.constant 1 : index
    %c0_29 = arith.constant 0 : index
    %c0_30 = arith.constant 0 : index
    %42 = vector.load %arg7[%c1_28, %c0_29, %c0_30] : memref<3x3x1xf32, #tpu.memory_space<vmem>>, vector<1x3x1xf32>
    %43 = vector.shape_cast %42 : vector<1x3x1xf32> to vector<3x1xf32>
    %44 = vector.broadcast %43 : vector<3x1xf32> to vector<3x256xf32>
    %45 = arith.addf %41, %44 : vector<3x256xf32>
    %cst_31 = arith.constant dense<0xFF800000> : vector<256xf32>
    %46 = vector.multi_reduction <maximumf>, %45, %cst_31 [0] : vector<3x256xf32> to vector<256xf32>
    %47 = vector.shape_cast %46 : vector<256xf32> to vector<1x256xf32>
    %48 = vector.broadcast %47 : vector<1x256xf32> to vector<3x256xf32>
    %49 = arith.subf %45, %48 : vector<3x256xf32>
    %50 = math.exp %49 : vector<3x256xf32>
    %cst_32 = arith.constant dense<0.000000e+00> : vector<256xf32>
    %51 = vector.multi_reduction <add>, %50, %cst_32 [0] : vector<3x256xf32> to vector<256xf32>
    %52 = vector.shape_cast %51 : vector<256xf32> to vector<1x256xf32>
    %53 = tpu.reciprocal %52 {approx = true} : vector<1x256xf32> -> vector<1x256xf32>
    %54 = arith.mulf %52, %53 : vector<1x256xf32>
    %cst_33 = arith.constant 2.000000e+00 : f32
    %55 = vector.broadcast %cst_33 : f32 to vector<1x256xf32>
    %56 = arith.subf %55, %54 : vector<1x256xf32>
    %57 = arith.mulf %53, %56 : vector<1x256xf32>
    %58 = vector.broadcast %57 : vector<1x256xf32> to vector<3x256xf32>
    %59 = arith.mulf %50, %58 : vector<3x256xf32>
    %c1_34 = arith.constant 1 : index
    %c0_35 = arith.constant 0 : index
    %c0_36 = arith.constant 0 : index
    %60 = vector.load %arg8[%c1_34, %c0_35, %c0_36] : memref<3x3x256xf32, #tpu.memory_space<vmem>>, vector<1x3x256xf32>
    %61 = vector.shape_cast %60 : vector<1x3x256xf32> to vector<3x256xf32>
    %62 = vector.shape_cast %59 : vector<3x256xf32> to vector<1x3x256xf32>
    tpu.vector_store %arg8[%c1_34, %c0_35, %c0_36], %62 {strides = array<i32>} : memref<3x3x256xf32, #tpu.memory_space<vmem>>, vector<1x3x256xf32>,
    %c2 = arith.constant 2 : index
    %c0_37 = arith.constant 0 : index
    %c0_38 = arith.constant 0 : index
    %63 = vector.load %arg6[%c2, %c0_37, %c0_38] : memref<3x3x9xf32, #tpu.memory_space<vmem>>, vector<1x3x9xf32>
    %64 = vector.shape_cast %63 : vector<1x3x9xf32> to vector<3x9xf32>
    %cst_39 = arith.constant dense<0.000000e+00> : vector<3x256xf32>
    %65 = tpu.matmul %64, %14, %cst_39 {dimension_numbers = #tpu.dot_dimension_numbers<[1], [0], [0], [1], [0, 0, 1, 1], [], []>, precision = #tpu.contract_precision<fp32>} : vector<3x9xf32>, vector<9x256xf32>, vector<3x256xf32> -> vector<3x256xf32>
    %c2_40 = arith.constant 2 : index
    %c0_41 = arith.constant 0 : index
    %c0_42 = arith.constant 0 : index
    %66 = vector.load %arg7[%c2_40, %c0_41, %c0_42] : memref<3x3x1xf32, #tpu.memory_space<vmem>>, vector<1x3x1xf32>
    %67 = vector.shape_cast %66 : vector<1x3x1xf32> to vector<3x1xf32>
    %68 = vector.broadcast %67 : vector<3x1xf32> to vector<3x256xf32>
    %69 = arith.addf %65, %68 : vector<3x256xf32>
    %cst_43 = arith.constant dense<0xFF800000> : vector<256xf32>
    %70 = vector.multi_reduction <maximumf>, %69, %cst_43 [0] : vector<3x256xf32> to vector<256xf32>
    %71 = vector.shape_cast %70 : vector<256xf32> to vector<1x256xf32>
    %72 = vector.broadcast %71 : vector<1x256xf32> to vector<3x256xf32>
    %73 = arith.subf %69, %72 : vector<3x256xf32>
    %74 = math.exp %73 : vector<3x256xf32>
    %cst_44 = arith.constant dense<0.000000e+00> : vector<256xf32>
    %75 = vector.multi_reduction <add>, %74, %cst_44 [0] : vector<3x256xf32> to vector<256xf32>
    %76 = vector.shape_cast %75 : vector<256xf32> to vector<1x256xf32>
    %77 = tpu.reciprocal %76 {approx = true} : vector<1x256xf32> -> vector<1x256xf32>
    %78 = arith.mulf %76, %77 : vector<1x256xf32>
    %cst_45 = arith.constant 2.000000e+00 : f32
    %79 = vector.broadcast %cst_45 : f32 to vector<1x256xf32>
    %80 = arith.subf %79, %78 : vector<1x256xf32>
    %81 = arith.mulf %77, %80 : vector<1x256xf32>
    %82 = vector.broadcast %81 : vector<1x256xf32> to vector<3x256xf32>
    %83 = arith.mulf %74, %82 : vector<3x256xf32>
    %c2_46 = arith.constant 2 : index
    %c0_47 = arith.constant 0 : index
    %c0_48 = arith.constant 0 : index
    %84 = vector.load %arg8[%c2_46, %c0_47, %c0_48] : memref<3x3x256xf32, #tpu.memory_space<vmem>>, vector<1x3x256xf32>
    %85 = vector.shape_cast %84 : vector<1x3x256xf32> to vector<3x256xf32>
    %86 = vector.shape_cast %83 : vector<3x256xf32> to vector<1x3x256xf32>
    tpu.vector_store %arg8[%c2_46, %c0_47, %c0_48], %86 {strides = array<i32>} : memref<3x3x256xf32, #tpu.memory_space<vmem>>, vector<1x3x256xf32>,
    return
  }
  func.func @transform_0(%arg0: i32) -> (i32, i32) {
    %c0_i32 = arith.constant 0 : i32
    %c0_i32_0 = arith.constant 0 : i32
    return %c0_i32, %arg0 : i32, i32
  }
  func.func @transform_1(%arg0: i32) -> (i32, i32) {
    %c0_i32 = arith.constant 0 : i32
    %c0_i32_0 = arith.constant 0 : i32
    %c0_i32_1 = arith.constant 0 : i32
    return %c0_i32, %c0_i32_0 : i32, i32
  }
  func.func @transform_2(%arg0: i32) -> (i32, i32) {
    %c0_i32 = arith.constant 0 : i32
    %c0_i32_0 = arith.constant 0 : i32
    %c0_i32_1 = arith.constant 0 : i32
    return %c0_i32, %c0_i32_0 : i32, i32
  }
  func.func @transform_3(%arg0: i32) -> (i32, i32) {
    %c0_i32 = arith.constant 0 : i32
    %c0_i32_0 = arith.constant 0 : i32
    %c0_i32_1 = arith.constant 0 : i32
    return %c0_i32, %c0_i32_0 : i32, i32
  }
  func.func @transform_4(%arg0: i32) -> (i32, i32) {
    %c0_i32 = arith.constant 0 : i32
    %c0_i32_0 = arith.constant 0 : i32
    %c0_i32_1 = arith.constant 0 : i32
    return %c0_i32, %c0_i32_0 : i32, i32
  }
  func.func @transform_5(%arg0: i32) -> (i32, i32, i32) {
    %c0_i32 = arith.constant 0 : i32
    %c0_i32_0 = arith.constant 0 : i32
    %c0_i32_1 = arith.constant 0 : i32
    %c0_i32_2 = arith.constant 0 : i32
    return %c0_i32, %c0_i32_0, %c0_i32_1 : i32, i32, i32
  }
  func.func @transform_6(%arg0: i32) -> (i32, i32, i32) {
    %c0_i32 = arith.constant 0 : i32
    %c0_i32_0 = arith.constant 0 : i32
    %c0_i32_1 = arith.constant 0 : i32
    %c0_i32_2 = arith.constant 0 : i32
    return %c0_i32, %c0_i32_0, %c0_i32_1 : i32, i32, i32
  }
  func.func @transform_7(%arg0: i32) -> (i32, i32, i32) {
    %c0_i32 = arith.constant 0 : i32
    %c0_i32_0 = arith.constant 0 : i32
    %c0_i32_1 = arith.constant 0 : i32
    return %c0_i32, %c0_i32_0, %arg0 : i32, i32, i32
  }
}

</mosaic_0001>

<llo_original>
// kernel: tpu_custom_call.1
$region0: #{tpu_custom_call.1}
  #allocation0 [shape = 'u32[]', space=smem, size = 0x4, offset = 0x4, fixed_abs, tag = 'smem constant byte address 0x4 - core index']
  #allocation1 [shape = 'u32[144,128]{1,0:T(1,128)}', space=vmem, size = 0x12000, scoped, tag = 'internal scratch']
  %s0 = inlined_call_operand.vmem [shape: f32[2,256], index: 0, kind: input, shape index: {}]
  %s1 = inlined_call_operand.vmem [shape: f32[9,2], index: 1, kind: input, shape index: {}]
  %s2 = inlined_call_operand.vmem [shape: f32[9,1], index: 2, kind: input, shape index: {}]
  %s3 = inlined_call_operand.vmem [shape: f32[9,9], index: 3, kind: input, shape index: {}]
  %s4 = inlined_call_operand.vmem [shape: f32[9,1], index: 4, kind: input, shape index: {}]
  %s5 = inlined_call_operand.vmem [shape: f32[3,3,9], index: 5, kind: input, shape index: {}]
  %s6 = inlined_call_operand.vmem [shape: f32[3,3,1], index: 6, kind: input, shape index: {}]
  %s7 = inlined_call_operand.hbm [shape: f32[3,3,256], index: 7, kind: output, shape index: {}]
  %s8 = sld [smem:[#allocation0]]
  $region38: #{tpu_custom_call.1} parent=0
    _
  %s10 = ssub.s32 1, %s8
  %s11 = scalar_select 0, %s10, %s8
  $region1: #{tpu_custom_call.1} parent=0
    #allocation2 [shape = 'u8[12288]{0}', space=vmem, size = 0x3000, scoped, tag = 'output window, operand 0, single buffered']
    #allocation3 [shape = 's32[1]{0}', space=sflag, size = 0x4, scoped, tag = 'scoped memory for tpu_custom_call.1']
    %12 = vsyncpa [#allocation3], 0
    // Predicated region
    $region2: #{tpu_custom_call.1} parent=1 // pred_check
      _
    $region3: #{tpu_custom_call.1} parent=1 // pred_check_branch
      %14 = sbr.rel (0) target = $region5
    $region4: #{tpu_custom_call.1} parent=1 // pred_region
      _
    $region5: #{tpu_custom_call.1} parent=1 // pred_fallthru
      _
    // Predicated region
    $region6: #{tpu_custom_call.1} parent=1 // pred_check
      _
    $region7: #{tpu_custom_call.1} parent=1 // pred_check_branch
      %16 = sbr.rel (0) target = $region9
    $region8: #{tpu_custom_call.1} parent=1 // pred_region
      _
    $region9: #{tpu_custom_call.1} parent=1 // pred_fallthru
      _
    // Predicated region
    $region10: #{tpu_custom_call.1} parent=1 // pred_check
      _
    $region11: #{tpu_custom_call.1} parent=1 // pred_check_branch
      %18 = sbr.rel (0) target = $region13
    $region12: #{tpu_custom_call.1} parent=1 // pred_region
      _
    $region13: #{tpu_custom_call.1} parent=1 // pred_fallthru
      _
    // Predicated region
    $region14: #{tpu_custom_call.1} parent=1 // pred_check
      _
    $region15: #{tpu_custom_call.1} parent=1 // pred_check_branch
      %20 = sbr.rel (0) target = $region17
    $region16: #{tpu_custom_call.1} parent=1 // pred_region
      _
    $region17: #{tpu_custom_call.1} parent=1 // pred_fallthru
      _
    // Predicated region
    $region18: #{tpu_custom_call.1} parent=1 // pred_check
      _
    $region19: #{tpu_custom_call.1} parent=1 // pred_check_branch
      %22 = sbr.rel (0) target = $region21
    $region20: #{tpu_custom_call.1} parent=1 // pred_region
      _
    $region21: #{tpu_custom_call.1} parent=1 // pred_fallthru
      _
    // Predicated region
    $region22: #{tpu_custom_call.1} parent=1 // pred_check
      _
    $region23: #{tpu_custom_call.1} parent=1 // pred_check_branch
      %24 = sbr.rel (0) target = $region25
    $region24: #{tpu_custom_call.1} parent=1 // pred_region
      _
    $region25: #{tpu_custom_call.1} parent=1 // pred_fallthru
      _
    // Predicated region
    $region26: #{tpu_custom_call.1} parent=1 // pred_check
      _
    $region27: #{tpu_custom_call.1} parent=1 // pred_check_branch
      %26 = sbr.rel (0) target = $region29
    $region28: #{tpu_custom_call.1} parent=1 // pred_region
      _
    $region29: #{tpu_custom_call.1} parent=1 // pred_fallthru
      _
    %v27 = vld [vmem:[%s0] sm:$0xf]
    %v28 = vld [vmem:[%s1] sm:$0xff]
    %v29 = vld [vmem:[%s1 + $0x8] sm:$0x1]
    %v30 = vld [vmem:[%s2] sm:$0xff]
    %v31 = vld [vmem:[%s2 + $0x8] sm:$0x1]
    %33 = vset.pattern.permute.xlu0 0
    %34 = vperm.xlu0 %33, %v30
    %v35 = vpop.permute.xlu0 %34
    %38 = vset.pattern.permute.xlu0 0
    %39 = vperm.xlu0 %38, %v31
    %v40 = vpop.permute.xlu0 %39
    %v44 = vunpack.c.l.s4 1983009808
    %v45 = vunpack.c.0.s8 %v44
    %v46 = vlaneseq
    %v47 = vshrl.u32 %v46, 7
    %v48 = vsub.s32 %v45, %v47
    %v49 = vrot.slane %v27, %v48
    %v50 = vcombine.high %v49, %v49
    %vm51 = vcmask 15360
    %v53 = vsel %vm51, %v28, 0
    %v56 = vsel %vm51, %v29, 0
    %vm58 = vcmask 1041408
    %v59 = vsel %vm58, %v49, 0
    %v61 = vsel %vm58, %v50, 0
    %v63 = vand.u32 %v61, 4294901760
    %64 = vmatprep.subr.mxu0 %v63
    %v65 = vand.u32 %v59, 4294901760
    %66 = vmatpush1.msra.mxu0 %v65
    %67 = vmatprep.subr.mxu0 0.0
    %68 = vmatpush1.msra.mxu0 0.0
    %69 = vmatprep.subr.mxu0 0.0
    %70 = vmatpush1.msra.mxu0 0.0
    %71 = vmatprep.subr.mxu0 0.0
    %72 = vmatpush1.msra.mxu0 0.0
    %73 = vmatprep.subr.mxu0 0.0
    %74 = vmatpush1.msra.mxu0 0.0
    %75 = vmatprep.subr.mxu0 0.0
    %76 = vmatpush1.msra.mxu0 0.0
    %77 = vmatprep.subr.mxu0 0.0
    %78 = vmatpush1.msra.mxu0 0.0
    %79 = vmatprep.subr.mxu0 0.0
    %80 = vmatpush1.msra.mxu0 0.0
    %81 = vmatprep.subr.mxu0 0.0
    %82 = vmatpush1.msra.mxu0 0.0
    %83 = vmatprep.subr.mxu0 0.0
    %84 = vmatpush1.msra.mxu0 0.0
    %85 = vmatprep.subr.mxu0 0.0
    %86 = vmatpush1.msra.mxu0 0.0
    %87 = vmatprep.subr.mxu0 0.0
    %88 = vmatpush1.msra.mxu0 0.0
    %89 = vmatprep.subr.mxu0 0.0
    %90 = vmatpush1.msra.mxu0 0.0
    %91 = vmatprep.subr.mxu0 0.0
    %92 = vmatpush1.msra.mxu0 0.0
    %93 = vmatprep.subr.mxu0 0.0
    %94 = vmatpush1.msra.mxu0 0.0
    %95 = vmatprep.subr.mxu0 0.0
    %96 = vmatpush1.msra.mxu0 0.0
    %97 = vmatprep.subr.mxu0 0.0
    %98 = vmatpush1.msra.mxu0 0.0
    %99 = vmatprep.subr.mxu0 0.0
    %100 = vmatpush1.msra.mxu0 0.0
    %101 = vmatprep.subr.mxu0 0.0
    %102 = vmatpush1.msra.mxu0 0.0
    %103 = vmatprep.subr.mxu0 0.0
    %104 = vmatpush1.msra.mxu0 0.0
    %105 = vmatprep.subr.mxu0 0.0
    %106 = vmatpush1.msra.mxu0 0.0
    %107 = vmatprep.subr.mxu0 0.0
    %108 = vmatpush1.msra.mxu0 0.0
    %109 = vmatprep.subr.mxu0 0.0
    %110 = vmatpush1.msra.mxu0 0.0
    %111 = vmatprep.subr.mxu0 0.0
    %112 = vmatpush1.msra.mxu0 0.0
    %113 = vmatprep.subr.mxu0 0.0
    %114 = vmatpush1.msra.mxu0 0.0
    %115 = vmatprep.subr.mxu0 0.0
    %116 = vmatpush1.msra.mxu0 0.0
    %117 = vmatprep.subr.mxu0 0.0
    %118 = vmatpush1.msra.mxu0 0.0
    %119 = vmatprep.subr.mxu0 0.0
    %120 = vmatpush1.msra.mxu0 0.0
    %121 = vmatprep.subr.mxu0 0.0
    %122 = vmatpush1.msra.mxu0 0.0
    %123 = vmatprep.subr.mxu0 0.0
    %124 = vmatpush1.msra.mxu0 0.0
    %125 = vmatprep.subr.mxu0 0.0
    %126 = vmatpush1.msra.mxu0 0.0
    %127 = vmatprep.subr.mxu0 0.0
    %128 = vmatpush1.msra.mxu0 0.0
    %129 = vmatprep.mubr.f32.mxu0 0.0
    %v130 = vand.u32 %v53, 4294901760
    %v131 = vsub.f32 %v53, %v130
    %v132 = vand.u32 %v131, 4294901760
    %v133 = vsub.f32 %v131, %v132
    %v134 = vand.u32 %v133, 4294901760
    %135 = vmatmul.mubr.f32.gmra.mrb[0].mxu0 %v134
    %v136 = vpop.f32.mrb[0].mxu0
    %v137 = vadd.f32 %v35, %v136
    %v138 = vpop.f32.mrb[0].mxu0
    %v139 = vadd.f32 %v35, %v138
    %140 = vmatprep.mubr.f32.mxu0 0.0
    %v141 = vand.u32 %v56, 4294901760
    %v142 = vsub.f32 %v56, %v141
    %v143 = vand.u32 %v142, 4294901760
    %v144 = vsub.f32 %v142, %v143
    %v145 = vand.u32 %v144, 4294901760
    %146 = vmatmul.mubr.f32.gmra.mrb[0].mxu0 %v145
    %v147 = vpop.f32.mrb[0].mxu0
    %v148 = vadd.f32 %v40, %v147
    %v149 = vpop.f32.mrb[0].mxu0
    %v150 = vadd.f32 %v40, %v149
    %151 = vdwg.mxu0
    %v152 = vand.u32 %v61, 4294901760
    %v153 = vsub.f32 %v61, %v152
    %v154 = vand.u32 %v153, 4294901760
    %v155 = vsub.f32 %v153, %v154
    %v156 = vand.u32 %v155, 4294901760
    %157 = vmatprep.subr.mxu0 %v156
    %v158 = vand.u32 %v59, 4294901760
    %v159 = vsub.f32 %v59, %v158
    %v160 = vand.u32 %v159, 4294901760
    %v161 = vsub.f32 %v159, %v160
    %v162 = vand.u32 %v161, 4294901760
    %163 = vmatpush1.msra.mxu0 %v162
    %164 = vmatprep.subr.mxu0 0.0
    %165 = vmatpush1.msra.mxu0 0.0
    %166 = vmatprep.subr.mxu0 0.0
    %167 = vmatpush1.msra.mxu0 0.0
    %168 = vmatprep.subr.mxu0 0.0
    %169 = vmatpush1.msra.mxu0 0.0
    %170 = vmatprep.subr.mxu0 0.0
    %171 = vmatpush1.msra.mxu0 0.0
    %172 = vmatprep.subr.mxu0 0.0
    %173 = vmatpush1.msra.mxu0 0.0
    %174 = vmatprep.subr.mxu0 0.0
    %175 = vmatpush1.msra.mxu0 0.0
    %176 = vmatprep.subr.mxu0 0.0
    %177 = vmatpush1.msra.mxu0 0.0
    %178 = vmatprep.subr.mxu0 0.0
    %179 = vmatpush1.msra.mxu0 0.0
    %180 = vmatprep.subr.mxu0 0.0
    %181 = vmatpush1.msra.mxu0 0.0
    %182 = vmatprep.subr.mxu0 0.0
    %183 = vmatpush1.msra.mxu0 0.0
    %184 = vmatprep.subr.mxu0 0.0
    %185 = vmatpush1.msra.mxu0 0.0
    %186 = vmatprep.subr.mxu0 0.0
    %187 = vmatpush1.msra.mxu0 0.0
    %188 = vmatprep.subr.mxu0 0.0
    %189 = vmatpush1.msra.mxu0 0.0
    %190 = vmatprep.subr.mxu0 0.0
    %191 = vmatpush1.msra.mxu0 0.0
    %192 = vmatprep.subr.mxu0 0.0
    %193 = vmatpush1.msra.mxu0 0.0
    %194 = vmatprep.subr.mxu0 0.0
    %195 = vmatpush1.msra.mxu0 0.0
    %196 = vmatprep.subr.mxu0 0.0
    %197 = vmatpush1.msra.mxu0 0.0
    %198 = vmatprep.subr.mxu0 0.0
    %199 = vmatpush1.msra.mxu0 0.0
    %200 = vmatprep.subr.mxu0 0.0
    %201 = vmatpush1.msra.mxu0 0.0
    %202 = vmatprep.subr.mxu0 0.0
    %203 = vmatpush1.msra.mxu0 0.0
    %204 = vmatprep.subr.mxu0 0.0
    %205 = vmatpush1.msra.mxu0 0.0
    %206 = vmatprep.subr.mxu0 0.0
    %207 = vmatpush1.msra.mxu0 0.0
    %208 = vmatprep.subr.mxu0 0.0
    %209 = vmatpush1.msra.mxu0 0.0
    %210 = vmatprep.subr.mxu0 0.0
    %211 = vmatpush1.msra.mxu0 0.0
    %212 = vmatprep.subr.mxu0 0.0
    %213 = vmatpush1.msra.mxu0 0.0
    %214 = vmatprep.subr.mxu0 0.0
    %215 = vmatpush1.msra.mxu0 0.0
    %216 = vmatprep.subr.mxu0 0.0
    %217 = vmatpush1.msra.mxu0 0.0
    %218 = vmatprep.subr.mxu0 0.0
    %219 = vmatpush1.msra.mxu0 0.0
    %220 = vmatprep.subr.mxu0 0.0
    %221 = vmatpush1.msra.mxu0 0.0
    %222 = vmatprep.subr.mxu0 0.0
    %223 = vmatpush1.msra.mxu0 0.0
    %224 = vmatprep.subr.mxu0 0.0
    %225 = vmatpush1.msra.mxu0 0.0
    %226 = vmatprep.mubr.f32.mxu0 0.0
    %v227 = vand.u32 %v53, 4294901760
    %228 = vmatmul.mubr.f32.gmra.mrb[0].mxu0 %v227
    %v229 = vpop.f32.mrb[0].mxu0
    %v230 = vadd.f32 %v137, %v229
    %v231 = vpop.f32.mrb[0].mxu0
    %v232 = vadd.f32 %v139, %v231
    %233 = vmatprep.mubr.f32.mxu0 0.0
    %v234 = vand.u32 %v56, 4294901760
    %235 = vmatmul.mubr.f32.gmra.mrb[0].mxu0 %v234
    %v236 = vpop.f32.mrb[0].mxu0
    %v237 = vadd.f32 %v148, %v236
    %v238 = vpop.f32.mrb[0].mxu0
    %v239 = vadd.f32 %v150, %v238
    %240 = vdwg.mxu0
    %v241 = vand.u32 %v61, 4294901760
    %v242 = vsub.f32 %v61, %v241
    %243 = vmatprep.subr.mxu0 %v242
    %v244 = vand.u32 %v59, 4294901760
    %v245 = vsub.f32 %v59, %v244
    %246 = vmatpush1.msra.mxu0 %v245
    %247 = vmatprep.subr.mxu0 0.0
    %248 = vmatpush1.msra.mxu0 0.0
    %249 = vmatprep.subr.mxu0 0.0
    %250 = vmatpush1.msra.mxu0 0.0
    %251 = vmatprep.subr.mxu0 0.0
    %252 = vmatpush1.msra.mxu0 0.0
    %253 = vmatprep.subr.mxu0 0.0
    %254 = vmatpush1.msra.mxu0 0.0
    %255 = vmatprep.subr.mxu0 0.0
    %256 = vmatpush1.msra.mxu0 0.0
    %257 = vmatprep.subr.mxu0 0.0
    %258 = vmatpush1.msra.mxu0 0.0
    %259 = vmatprep.subr.mxu0 0.0
    %260 = vmatpush1.msra.mxu0 0.0
    %261 = vmatprep.subr.mxu0 0.0
    %262 = vmatpush1.msra.mxu0 0.0
    %263 = vmatprep.subr.mxu0 0.0
    %264 = vmatpush1.msra.mxu0 0.0
    %265 = vmatprep.subr.mxu0 0.0
    %266 = vmatpush1.msra.mxu0 0.0
    %267 = vmatprep.subr.mxu0 0.0
    %268 = vmatpush1.msra.mxu0 0.0
    %269 = vmatprep.subr.mxu0 0.0
    %270 = vmatpush1.msra.mxu0 0.0
    %271 = vmatprep.subr.mxu0 0.0
    %272 = vmatpush1.msra.mxu0 0.0
    %273 = vmatprep.subr.mxu0 0.0
    %274 = vmatpush1.msra.mxu0 0.0
    %275 = vmatprep.subr.mxu0 0.0
    %276 = vmatpush1.msra.mxu0 0.0
    %277 = vmatprep.subr.mxu0 0.0
    %278 = vmatpush1.msra.mxu0 0.0
    %279 = vmatprep.subr.mxu0 0.0
    %280 = vmatpush1.msra.mxu0 0.0
    %281 = vmatprep.subr.mxu0 0.0
    %282 = vmatpush1.msra.mxu0 0.0
    %283 = vmatprep.subr.mxu0 0.0
    %284 = vmatpush1.msra.mxu0 0.0
    %285 = vmatprep.subr.mxu0 0.0
    %286 = vmatpush1.msra.mxu0 0.0
    %287 = vmatprep.subr.mxu0 0.0
    %288 = vmatpush1.msra.mxu0 0.0
    %289 = vmatprep.subr.mxu0 0.0
    %290 = vmatpush1.msra.mxu0 0.0
    %291 = vmatprep.subr.mxu0 0.0
    %292 = vmatpush1.msra.mxu0 0.0
    %293 = vmatprep.subr.mxu0 0.0
    %294 = vmatpush1.msra.mxu0 0.0
    %295 = vmatprep.subr.mxu0 0.0
    %296 = vmatpush1.msra.mxu0 0.0
    %297 = vmatprep.subr.mxu0 0.0
    %298 = vmatpush1.msra.mxu0 0.0
    %299 = vmatprep.subr.mxu0 0.0
    %300 = vmatpush1.msra.mxu0 0.0
    %301 = vmatprep.subr.mxu0 0.0
    %302 = vmatpush1.msra.mxu0 0.0
    %303 = vmatprep.subr.mxu0 0.0
    %304 = vmatpush1.msra.mxu0 0.0
    %305 = vmatprep.subr.mxu0 0.0
    %306 = vmatpush1.msra.mxu0 0.0
    %307 = vmatprep.subr.mxu0 0.0
    %308 = vmatpush1.msra.mxu0 0.0
    %309 = vmatprep.mubr.f32.mxu0 0.0
    %v310 = vand.u32 %v53, 4294901760
    %v311 = vsub.f32 %v53, %v310
    %312 = vmatmul.mubr.f32.gmra.mrb[0].mxu0 %v311
    %v313 = vpop.f32.mrb[0].mxu0
    %v314 = vadd.f32 %v230, %v313
    %v315 = vpop.f32.mrb[0].mxu0
    %v316 = vadd.f32 %v232, %v315
    %317 = vmatprep.mubr.f32.mxu0 0.0
    %v318 = vand.u32 %v56, 4294901760
    %v319 = vsub.f32 %v56, %v318
    %320 = vmatmul.mubr.f32.gmra.mrb[0].mxu0 %v319
    %v321 = vpop.f32.mrb[0].mxu0
    %v322 = vadd.f32 %v237, %v321
    %v323 = vpop.f32.mrb[0].mxu0
    %v324 = vadd.f32 %v239, %v323
    %325 = vdwg.mxu0
    %v326 = vand.u32 %v61, 4294901760
    %327 = vmatprep.subr.mxu0 %v326
    %v328 = vand.u32 %v59, 4294901760
    %329 = vmatpush1.msra.mxu0 %v328
    %330 = vmatprep.subr.mxu0 0.0
    %331 = vmatpush1.msra.mxu0 0.0
    %332 = vmatprep.subr.mxu0 0.0
    %333 = vmatpush1.msra.mxu0 0.0
    %334 = vmatprep.subr.mxu0 0.0
    %335 = vmatpush1.msra.mxu0 0.0
    %336 = vmatprep.subr.mxu0 0.0
    %337 = vmatpush1.msra.mxu0 0.0
    %338 = vmatprep.subr.mxu0 0.0
    %339 = vmatpush1.msra.mxu0 0.0
    %340 = vmatprep.subr.mxu0 0.0
    %341 = vmatpush1.msra.mxu0 0.0
    %342 = vmatprep.subr.mxu0 0.0
    %343 = vmatpush1.msra.mxu0 0.0
    %344 = vmatprep.subr.mxu0 0.0
    %345 = vmatpush1.msra.mxu0 0.0
    %346 = vmatprep.subr.mxu0 0.0
    %347 = vmatpush1.msra.mxu0 0.0
    %348 = vmatprep.subr.mxu0 0.0
    %349 = vmatpush1.msra.mxu0 0.0
    %350 = vmatprep.subr.mxu0 0.0
    %351 = vmatpush1.msra.mxu0 0.0
    %352 = vmatprep.subr.mxu0 0.0
    %353 = vmatpush1.msra.mxu0 0.0
    %354 = vmatprep.subr.mxu0 0.0
    %355 = vmatpush1.msra.mxu0 0.0
    %356 = vmatprep.subr.mxu0 0.0
    %357 = vmatpush1.msra.mxu0 0.0
    %358 = vmatprep.subr.mxu0 0.0
    %359 = vmatpush1.msra.mxu0 0.0
    %360 = vmatprep.subr.mxu0 0.0
    %361 = vmatpush1.msra.mxu0 0.0
    %362 = vmatprep.subr.mxu0 0.0
    %363 = vmatpush1.msra.mxu0 0.0
    %364 = vmatprep.subr.mxu0 0.0
    %365 = vmatpush1.msra.mxu0 0.0
    %366 = vmatprep.subr.mxu0 0.0
    %367 = vmatpush1.msra.mxu0 0.0
    %368 = vmatprep.subr.mxu0 0.0
    %369 = vmatpush1.msra.mxu0 0.0
    %370 = vmatprep.subr.mxu0 0.0
    %371 = vmatpush1.msra.mxu0 0.0
    %372 = vmatprep.subr.mxu0 0.0
    %373 = vmatpush1.msra.mxu0 0.0
    %374 = vmatprep.subr.mxu0 0.0
    %375 = vmatpush1.msra.mxu0 0.0
    %376 = vmatprep.subr.mxu0 0.0
    %377 = vmatpush1.msra.mxu0 0.0
    %378 = vmatprep.subr.mxu0 0.0
    %379 = vmatpush1.msra.mxu0 0.0
    %380 = vmatprep.subr.mxu0 0.0
    %381 = vmatpush1.msra.mxu0 0.0
    %382 = vmatprep.subr.mxu0 0.0
    %383 = vmatpush1.msra.mxu0 0.0
    %384 = vmatprep.subr.mxu0 0.0
    %385 = vmatpush1.msra.mxu0 0.0
    %386 = vmatprep.subr.mxu0 0.0
    %387 = vmatpush1.msra.mxu0 0.0
    %388 = vmatprep.subr.mxu0 0.0
    %389 = vmatpush1.msra.mxu0 0.0
    %390 = vmatprep.subr.mxu0 0.0
    %391 = vmatpush1.msra.mxu0 0.0
    %392 = vmatprep.mubr.f32.mxu0 0.0
    %v393 = vand.u32 %v53, 4294901760
    %v394 = vsub.f32 %v53, %v393
    %v395 = vand.u32 %v394, 4294901760
    %396 = vmatmul.mubr.f32.gmra.mrb[0].mxu0 %v395
    %v397 = vpop.f32.mrb[0].mxu0
    %v398 = vadd.f32 %v314, %v397
    %v399 = vpop.f32.mrb[0].mxu0
    %v400 = vadd.f32 %v316, %v399
    %401 = vmatprep.mubr.f32.mxu0 0.0
    %v402 = vand.u32 %v56, 4294901760
    %v403 = vsub.f32 %v56, %v402
    %v404 = vand.u32 %v403, 4294901760
    %405 = vmatmul.mubr.f32.gmra.mrb[0].mxu0 %v404
    %v406 = vpop.f32.mrb[0].mxu0
    %v407 = vadd.f32 %v322, %v406
    %v408 = vpop.f32.mrb[0].mxu0
    %v409 = vadd.f32 %v324, %v408
    %410 = vdwg.mxu0
    %v411 = vand.u32 %v61, 4294901760
    %v412 = vsub.f32 %v61, %v411
    %v413 = vand.u32 %v412, 4294901760
    %414 = vmatprep.subr.mxu0 %v413
    %v415 = vand.u32 %v59, 4294901760
    %v416 = vsub.f32 %v59, %v415
    %v417 = vand.u32 %v416, 4294901760
    %418 = vmatpush1.msra.mxu0 %v417
    %419 = vmatprep.subr.mxu0 0.0
    %420 = vmatpush1.msra.mxu0 0.0
    %421 = vmatprep.subr.mxu0 0.0
    %422 = vmatpush1.msra.mxu0 0.0
    %423 = vmatprep.subr.mxu0 0.0
    %424 = vmatpush1.msra.mxu0 0.0
    %425 = vmatprep.subr.mxu0 0.0
    %426 = vmatpush1.msra.mxu0 0.0
    %427 = vmatprep.subr.mxu0 0.0
    %428 = vmatpush1.msra.mxu0 0.0
    %429 = vmatprep.subr.mxu0 0.0
    %430 = vmatpush1.msra.mxu0 0.0
    %431 = vmatprep.subr.mxu0 0.0
    %432 = vmatpush1.msra.mxu0 0.0
    %433 = vmatprep.subr.mxu0 0.0
    %434 = vmatpush1.msra.mxu0 0.0
    %435 = vmatprep.subr.mxu0 0.0
    %436 = vmatpush1.msra.mxu0 0.0
    %437 = vmatprep.subr.mxu0 0.0
    %438 = vmatpush1.msra.mxu0 0.0
    %439 = vmatprep.subr.mxu0 0.0
    %440 = vmatpush1.msra.mxu0 0.0
    %441 = vmatprep.subr.mxu0 0.0
    %442 = vmatpush1.msra.mxu0 0.0
    %443 = vmatprep.subr.mxu0 0.0
    %444 = vmatpush1.msra.mxu0 0.0
    %445 = vmatprep.subr.mxu0 0.0
    %446 = vmatpush1.msra.mxu0 0.0
    %447 = vmatprep.subr.mxu0 0.0
    %448 = vmatpush1.msra.mxu0 0.0
    %449 = vmatprep.subr.mxu0 0.0
    %450 = vmatpush1.msra.mxu0 0.0
    %451 = vmatprep.subr.mxu0 0.0
    %452 = vmatpush1.msra.mxu0 0.0
    %453 = vmatprep.subr.mxu0 0.0
    %454 = vmatpush1.msra.mxu0 0.0
    %455 = vmatprep.subr.mxu0 0.0
    %456 = vmatpush1.msra.mxu0 0.0
    %457 = vmatprep.subr.mxu0 0.0
    %458 = vmatpush1.msra.mxu0 0.0
    %459 = vmatprep.subr.mxu0 0.0
    %460 = vmatpush1.msra.mxu0 0.0
    %461 = vmatprep.subr.mxu0 0.0
    %462 = vmatpush1.msra.mxu0 0.0
    %463 = vmatprep.subr.mxu0 0.0
    %464 = vmatpush1.msra.mxu0 0.0
    %465 = vmatprep.subr.mxu0 0.0
    %466 = vmatpush1.msra.mxu0 0.0
    %467 = vmatprep.subr.mxu0 0.0
    %468 = vmatpush1.msra.mxu0 0.0
    %469 = vmatprep.subr.mxu0 0.0
    %470 = vmatpush1.msra.mxu0 0.0
    %471 = vmatprep.subr.mxu0 0.0
    %472 = vmatpush1.msra.mxu0 0.0
    %473 = vmatprep.subr.mxu0 0.0
    %474 = vmatpush1.msra.mxu0 0.0
    %475 = vmatprep.subr.mxu0 0.0
    %476 = vmatpush1.msra.mxu0 0.0
    %477 = vmatprep.subr.mxu0 0.0
    %478 = vmatpush1.msra.mxu0 0.0
    %479 = vmatprep.subr.mxu0 0.0
    %480 = vmatpush1.msra.mxu0 0.0
    %481 = vmatprep.mubr.f32.mxu0 0.0
    %v482 = vand.u32 %v53, 4294901760
    %483 = vmatmul.mubr.f32.gmra.mrb[0].mxu0 %v482
    %v484 = vpop.f32.mrb[0].mxu0
    %v485 = vadd.f32 %v398, %v484
    %v486 = vpop.f32.mrb[0].mxu0
    %v487 = vadd.f32 %v400, %v486
    %488 = vmatprep.mubr.f32.mxu0 0.0
    %v489 = vand.u32 %v56, 4294901760
    %490 = vmatmul.mubr.f32.gmra.mrb[0].mxu0 %v489
    %v491 = vpop.f32.mrb[0].mxu0
    %v492 = vadd.f32 %v407, %v491
    %v493 = vpop.f32.mrb[0].mxu0
    %v494 = vadd.f32 %v409, %v493
    %495 = vdwg.mxu0
    %v496 = vand.u32 %v61, 4294901760
    %497 = vmatprep.subr.mxu0 %v496
    %v498 = vand.u32 %v59, 4294901760
    %499 = vmatpush1.msra.mxu0 %v498
    %500 = vmatprep.subr.mxu0 0.0
    %501 = vmatpush1.msra.mxu0 0.0
    %502 = vmatprep.subr.mxu0 0.0
    %503 = vmatpush1.msra.mxu0 0.0
    %504 = vmatprep.subr.mxu0 0.0
    %505 = vmatpush1.msra.mxu0 0.0
    %506 = vmatprep.subr.mxu0 0.0
    %507 = vmatpush1.msra.mxu0 0.0
    %508 = vmatprep.subr.mxu0 0.0
    %509 = vmatpush1.msra.mxu0 0.0
    %510 = vmatprep.subr.mxu0 0.0
    %511 = vmatpush1.msra.mxu0 0.0
    %512 = vmatprep.subr.mxu0 0.0
    %513 = vmatpush1.msra.mxu0 0.0
    %514 = vmatprep.subr.mxu0 0.0
    %515 = vmatpush1.msra.mxu0 0.0
    %516 = vmatprep.subr.mxu0 0.0
    %517 = vmatpush1.msra.mxu0 0.0
    %518 = vmatprep.subr.mxu0 0.0
    %519 = vmatpush1.msra.mxu0 0.0
    %520 = vmatprep.subr.mxu0 0.0
    %521 = vmatpush1.msra.mxu0 0.0
    %522 = vmatprep.subr.mxu0 0.0
    %523 = vmatpush1.msra.mxu0 0.0
    %524 = vmatprep.subr.mxu0 0.0
    %525 = vmatpush1.msra.mxu0 0.0
    %526 = vmatprep.subr.mxu0 0.0
    %527 = vmatpush1.msra.mxu0 0.0
    %528 = vmatprep.subr.mxu0 0.0
    %529 = vmatpush1.msra.mxu0 0.0
    %530 = vmatprep.subr.mxu0 0.0
    %531 = vmatpush1.msra.mxu0 0.0
    %532 = vmatprep.subr.mxu0 0.0
    %533 = vmatpush1.msra.mxu0 0.0
    %534 = vmatprep.subr.mxu0 0.0
    %535 = vmatpush1.msra.mxu0 0.0
    %536 = vmatprep.subr.mxu0 0.0
    %537 = vmatpush1.msra.mxu0 0.0
    %538 = vmatprep.subr.mxu0 0.0
    %539 = vmatpush1.msra.mxu0 0.0
    %540 = vmatprep.subr.mxu0 0.0
    %541 = vmatpush1.msra.mxu0 0.0
    %542 = vmatprep.subr.mxu0 0.0
    %543 = vmatpush1.msra.mxu0 0.0
    %544 = vmatprep.subr.mxu0 0.0
    %545 = vmatpush1.msra.mxu0 0.0
    %546 = vmatprep.subr.mxu0 0.0
    %547 = vmatpush1.msra.mxu0 0.0
    %548 = vmatprep.subr.mxu0 0.0
    %549 = vmatpush1.msra.mxu0 0.0
    %550 = vmatprep.subr.mxu0 0.0
    %551 = vmatpush1.msra.mxu0 0.0
    %552 = vmatprep.subr.mxu0 0.0
    %553 = vmatpush1.msra.mxu0 0.0
    %554 = vmatprep.subr.mxu0 0.0
    %555 = vmatpush1.msra.mxu0 0.0
    %556 = vmatprep.subr.mxu0 0.0
    %557 = vmatpush1.msra.mxu0 0.0
    %558 = vmatprep.subr.mxu0 0.0
    %559 = vmatpush1.msra.mxu0 0.0
    %560 = vmatprep.subr.mxu0 0.0
    %561 = vmatpush1.msra.mxu0 0.0
    %562 = vmatprep.mubr.f32.mxu0 0.0
    %v563 = vand.u32 %v53, 4294901760
    %564 = vmatmul.mubr.f32.gmra.mrb[0].mxu0 %v563
    %v565 = vpop.f32.mrb[0].mxu0
    %v566 = vadd.f32 %v485, %v565
    %v567 = vpop.f32.mrb[0].mxu0
    %v568 = vadd.f32 %v487, %v567
    %569 = vmatprep.mubr.f32.mxu0 0.0
    %v570 = vand.u32 %v56, 4294901760
    %571 = vmatmul.mubr.f32.gmra.mrb[0].mxu0 %v570
    %v572 = vpop.f32.mrb[0].mxu0
    %v573 = vadd.f32 %v492, %v572
    %v574 = vpop.f32.mrb[0].mxu0
    %v575 = vadd.f32 %v494, %v574
    %576 = vdwg.mxu0
    %v577 = vmax.f32 %v566, 0.0
    %v578 = vmax.f32 %v568, 0.0
    %v579 = vmax.f32 %v573, 0.0
    %v580 = vmax.f32 %v575, 0.0
    %v581 = vld [vmem:[%s3] sm:$0xff]
    %v582 = vld [vmem:[%s3 + $0x8] sm:$0x1]
    %v583 = vld [vmem:[%s4] sm:$0xff]
    %v584 = vld [vmem:[%s4 + $0x8] sm:$0x1]
    %586 = vset.pattern.permute.xlu0 0
    %587 = vperm.xlu0 %586, %v583
    %v588 = vpop.permute.xlu0 %587
    %591 = vset.pattern.permute.xlu0 0
    %592 = vperm.xlu0 %591, %v584
    %v593 = vpop.permute.xlu0 %592
    %vm595 = vcmask 72704
    %v597 = vsel %vm595, %v581, 0
    %v600 = vsel %vm595, %v582, 0
    %vm602 = vcmask 1040384
    %v604 = vsel %vm602, %v579, 0
    %v607 = vsel %vm602, %v580, 0
    %v609 = vand.u32 %v578, 4294901760
    %610 = vmatprep.subr.mxu0 %v609
    %v611 = vand.u32 %v577, 4294901760
    %612 = vmatpush1.msra.mxu0 %v611
    %v613 = vand.u32 %v607, 4294901760
    %614 = vmatprep.subr.mxu0 %v613
    %v615 = vand.u32 %v604, 4294901760
    %616 = vmatpush1.msra.mxu0 %v615
    %617 = vmatprep.subr.mxu0 0.0
    %618 = vmatpush1.msra.mxu0 0.0
    %619 = vmatprep.subr.mxu0 0.0
    %620 = vmatpush1.msra.mxu0 0.0
    %621 = vmatprep.subr.mxu0 0.0
    %622 = vmatpush1.msra.mxu0 0.0
    %623 = vmatprep.subr.mxu0 0.0
    %624 = vmatpush1.msra.mxu0 0.0
    %625 = vmatprep.subr.mxu0 0.0
    %626 = vmatpush1.msra.mxu0 0.0
    %627 = vmatprep.subr.mxu0 0.0
    %628 = vmatpush1.msra.mxu0 0.0
    %629 = vmatprep.subr.mxu0 0.0
    %630 = vmatpush1.msra.mxu0 0.0
    %631 = vmatprep.subr.mxu0 0.0
    %632 = vmatpush1.msra.mxu0 0.0
    %633 = vmatprep.subr.mxu0 0.0
    %634 = vmatpush1.msra.mxu0 0.0
    %635 = vmatprep.subr.mxu0 0.0
    %636 = vmatpush1.msra.mxu0 0.0
    %637 = vmatprep.subr.mxu0 0.0
    %638 = vmatpush1.msra.mxu0 0.0
    %639 = vmatprep.subr.mxu0 0.0
    %640 = vmatpush1.msra.mxu0 0.0
    %641 = vmatprep.subr.mxu0 0.0
    %642 = vmatpush1.msra.mxu0 0.0
    %643 = vmatprep.subr.mxu0 0.0
    %644 = vmatpush1.msra.mxu0 0.0
    %645 = vmatprep.subr.mxu0 0.0
    %646 = vmatpush1.msra.mxu0 0.0
    %647 = vmatprep.subr.mxu0 0.0
    %648 = vmatpush1.msra.mxu0 0.0
    %649 = vmatprep.subr.mxu0 0.0
    %650 = vmatpush1.msra.mxu0 0.0
    %651 = vmatprep.subr.mxu0 0.0
    %652 = vmatpush1.msra.mxu0 0.0
    %653 = vmatprep.subr.mxu0 0.0
    %654 = vmatpush1.msra.mxu0 0.0
    %655 = vmatprep.subr.mxu0 0.0
    %656 = vmatpush1.msra.mxu0 0.0
    %657 = vmatprep.subr.mxu0 0.0
    %658 = vmatpush1.msra.mxu0 0.0
    %659 = vmatprep.subr.mxu0 0.0
    %660 = vmatpush1.msra.mxu0 0.0
    %661 = vmatprep.subr.mxu0 0.0
    %662 = vmatpush1.msra.mxu0 0.0
    %663 = vmatprep.subr.mxu0 0.0
    %664 = vmatpush1.msra.mxu0 0.0
    %665 = vmatprep.subr.mxu0 0.0
    %666 = vmatpush1.msra.mxu0 0.0
    %667 = vmatprep.subr.mxu0 0.0
    %668 = vmatpush1.msra.mxu0 0.0
    %669 = vmatprep.subr.mxu0 0.0
    %670 = vmatpush1.msra.mxu0 0.0
    %671 = vmatprep.subr.mxu0 0.0
    %672 = vmatpush1.msra.mxu0 0.0
    %673 = vmatprep.subr.mxu0 0.0
    %674 = vmatpush1.msra.mxu0 0.0
    %675 = vmatprep.subr.mxu0 0.0
    %676 = vmatpush1.msra.mxu0 0.0
    %677 = vmatprep.mubr.f32.mxu0 0.0
    %v678 = vand.u32 %v597, 4294901760
    %v679 = vsub.f32 %v597, %v678
    %v680 = vand.u32 %v679, 4294901760
    %v681 = vsub.f32 %v679, %v680
    %v682 = vand.u32 %v681, 4294901760
    %683 = vmatmul.mubr.f32.gmra.mrb[0].mxu0 %v682
    %v684 = vpop.f32.mrb[0].mxu0
    %v685 = vadd.f32 %v588, %v684
    %v686 = vpop.f32.mrb[0].mxu0
    %v687 = vadd.f32 %v588, %v686
    %688 = vmatprep.mubr.f32.mxu0 0.0
    %v689 = vand.u32 %v600, 4294901760
    %v690 = vsub.f32 %v600, %v689
    %v691 = vand.u32 %v690, 4294901760
    %v692 = vsub.f32 %v690, %v691
    %v693 = vand.u32 %v692, 4294901760
    %694 = vmatmul.mubr.f32.gmra.mrb[0].mxu0 %v693
    %v695 = vpop.f32.mrb[0].mxu0
    %v696 = vadd.f32 %v593, %v695
    %v697 = vpop.f32.mrb[0].mxu0
    %v698 = vadd.f32 %v593, %v697
    %699 = vdwg.mxu0
    %v700 = vand.u32 %v578, 4294901760
    %v701 = vsub.f32 %v578, %v700
    %v702 = vand.u32 %v701, 4294901760
    %v703 = vsub.f32 %v701, %v702
    %v704 = vand.u32 %v703, 4294901760
    %705 = vmatprep.subr.mxu0 %v704
    %v706 = vand.u32 %v577, 4294901760
    %v707 = vsub.f32 %v577, %v706
    %v708 = vand.u32 %v707, 4294901760
    %v709 = vsub.f32 %v707, %v708
    %v710 = vand.u32 %v709, 4294901760
    %711 = vmatpush1.msra.mxu0 %v710
    %v712 = vand.u32 %v607, 4294901760
    %v713 = vsub.f32 %v607, %v712
    %v714 = vand.u32 %v713, 4294901760
    %v715 = vsub.f32 %v713, %v714
    %v716 = vand.u32 %v715, 4294901760
    %717 = vmatprep.subr.mxu0 %v716
    %v718 = vand.u32 %v604, 4294901760
    %v719 = vsub.f32 %v604, %v718
    %v720 = vand.u32 %v719, 4294901760
    %v721 = vsub.f32 %v719, %v720
    %v722 = vand.u32 %v721, 4294901760
    %723 = vmatpush1.msra.mxu0 %v722
    %724 = vmatprep.subr.mxu0 0.0
    %725 = vmatpush1.msra.mxu0 0.0
    %726 = vmatprep.subr.mxu0 0.0
    %727 = vmatpush1.msra.mxu0 0.0
    %728 = vmatprep.subr.mxu0 0.0
    %729 = vmatpush1.msra.mxu0 0.0
    %730 = vmatprep.subr.mxu0 0.0
    %731 = vmatpush1.msra.mxu0 0.0
    %732 = vmatprep.subr.mxu0 0.0
    %733 = vmatpush1.msra.mxu0 0.0
    %734 = vmatprep.subr.mxu0 0.0
    %735 = vmatpush1.msra.mxu0 0.0
    %736 = vmatprep.subr.mxu0 0.0
    %737 = vmatpush1.msra.mxu0 0.0
    %738 = vmatprep.subr.mxu0 0.0
    %739 = vmatpush1.msra.mxu0 0.0
    %740 = vmatprep.subr.mxu0 0.0
    %741 = vmatpush1.msra.mxu0 0.0
    %742 = vmatprep.subr.mxu0 0.0
    %743 = vmatpush1.msra.mxu0 0.0
    %744 = vmatprep.subr.mxu0 0.0
    %745 = vmatpush1.msra.mxu0 0.0
    %746 = vmatprep.subr.mxu0 0.0
    %747 = vmatpush1.msra.mxu0 0.0
    %748 = vmatprep.subr.mxu0 0.0
    %749 = vmatpush1.msra.mxu0 0.0
    %750 = vmatprep.subr.mxu0 0.0
    %751 = vmatpush1.msra.mxu0 0.0
    %752 = vmatprep.subr.mxu0 0.0
    %753 = vmatpush1.msra.mxu0 0.0
    %754 = vmatprep.subr.mxu0 0.0
    %755 = vmatpush1.msra.mxu0 0.0
    %756 = vmatprep.subr.mxu0 0.0
    %757 = vmatpush1.msra.mxu0 0.0
    %758 = vmatprep.subr.mxu0 0.0
    %759 = vmatpush1.msra.mxu0 0.0
    %760 = vmatprep.subr.mxu0 0.0
    %761 = vmatpush1.msra.mxu0 0.0
    %762 = vmatprep.subr.mxu0 0.0
    %763 = vmatpush1.msra.mxu0 0.0
    %764 = vmatprep.subr.mxu0 0.0
    %765 = vmatpush1.msra.mxu0 0.0
    %766 = vmatprep.subr.mxu0 0.0
    %767 = vmatpush1.msra.mxu0 0.0
    %768 = vmatprep.subr.mxu0 0.0
    %769 = vmatpush1.msra.mxu0 0.0
    %770 = vmatprep.subr.mxu0 0.0
    %771 = vmatpush1.msra.mxu0 0.0
    %772 = vmatprep.subr.mxu0 0.0
    %773 = vmatpush1.msra.mxu0 0.0
    %774 = vmatprep.subr.mxu0 0.0
    %775 = vmatpush1.msra.mxu0 0.0
    %776 = vmatprep.subr.mxu0 0.0
    %777 = vmatpush1.msra.mxu0 0.0
    %778 = vmatprep.subr.mxu0 0.0
    %779 = vmatpush1.msra.mxu0 0.0
    %780 = vmatprep.subr.mxu0 0.0
    %781 = vmatpush1.msra.mxu0 0.0
    %782 = vmatprep.subr.mxu0 0.0
    %783 = vmatpush1.msra.mxu0 0.0
    %784 = vmatprep.mubr.f32.mxu0 0.0
    %v785 = vand.u32 %v597, 4294901760
    %786 = vmatmul.mubr.f32.gmra.mrb[0].mxu0 %v785
    %v787 = vpop.f32.mrb[0].mxu0
    %v788 = vadd.f32 %v685, %v787
    %v789 = vpop.f32.mrb[0].mxu0
    %v790 = vadd.f32 %v687, %v789
    %791 = vmatprep.mubr.f32.mxu0 0.0
    %v792 = vand.u32 %v600, 4294901760
    %793 = vmatmul.mubr.f32.gmra.mrb[0].mxu0 %v792
    %v794 = vpop.f32.mrb[0].mxu0
    %v795 = vadd.f32 %v696, %v794
    %v796 = vpop.f32.mrb[0].mxu0
    %v797 = vadd.f32 %v698, %v796
    %798 = vdwg.mxu0
    %v799 = vand.u32 %v578, 4294901760
    %v800 = vsub.f32 %v578, %v799
    %801 = vmatprep.subr.mxu0 %v800
    %v802 = vand.u32 %v577, 4294901760
    %v803 = vsub.f32 %v577, %v802
    %804 = vmatpush1.msra.mxu0 %v803
    %v805 = vand.u32 %v607, 4294901760
    %v806 = vsub.f32 %v607, %v805
    %807 = vmatprep.subr.mxu0 %v806
    %v808 = vand.u32 %v604, 4294901760
    %v809 = vsub.f32 %v604, %v808
    %810 = vmatpush1.msra.mxu0 %v809
    %811 = vmatprep.subr.mxu0 0.0
    %812 = vmatpush1.msra.mxu0 0.0
    %813 = vmatprep.subr.mxu0 0.0
    %814 = vmatpush1.msra.mxu0 0.0
    %815 = vmatprep.subr.mxu0 0.0
    %816 = vmatpush1.msra.mxu0 0.0
    %817 = vmatprep.subr.mxu0 0.0
    %818 = vmatpush1.msra.mxu0 0.0
    %819 = vmatprep.subr.mxu0 0.0
    %820 = vmatpush1.msra.mxu0 0.0
    %821 = vmatprep.subr.mxu0 0.0
    %822 = vmatpush1.msra.mxu0 0.0
    %823 = vmatprep.subr.mxu0 0.0
    %824 = vmatpush1.msra.mxu0 0.0
    %825 = vmatprep.subr.mxu0 0.0
    %826 = vmatpush1.msra.mxu0 0.0
    %827 = vmatprep.subr.mxu0 0.0
    %828 = vmatpush1.msra.mxu0 0.0
    %829 = vmatprep.subr.mxu0 0.0
    %830 = vmatpush1.msra.mxu0 0.0
    %831 = vmatprep.subr.mxu0 0.0
    %832 = vmatpush1.msra.mxu0 0.0
    %833 = vmatprep.subr.mxu0 0.0
    %834 = vmatpush1.msra.mxu0 0.0
    %835 = vmatprep.subr.mxu0 0.0
    %836 = vmatpush1.msra.mxu0 0.0
    %837 = vmatprep.subr.mxu0 0.0
    %838 = vmatpush1.msra.mxu0 0.0
    %839 = vmatprep.subr.mxu0 0.0
    %840 = vmatpush1.msra.mxu0 0.0
    %841 = vmatprep.subr.mxu0 0.0
    %842 = vmatpush1.msra.mxu0 0.0
    %843 = vmatprep.subr.mxu0 0.0
    %844 = vmatpush1.msra.mxu0 0.0
    %845 = vmatprep.subr.mxu0 0.0
    %846 = vmatpush1.msra.mxu0 0.0
    %847 = vmatprep.subr.mxu0 0.0
    %848 = vmatpush1.msra.mxu0 0.0
    %849 = vmatprep.subr.mxu0 0.0
    %850 = vmatpush1.msra.mxu0 0.0
    %851 = vmatprep.subr.mxu0 0.0
    %852 = vmatpush1.msra.mxu0 0.0
    %853 = vmatprep.subr.mxu0 0.0
    %854 = vmatpush1.msra.mxu0 0.0
    %855 = vmatprep.subr.mxu0 0.0
    %856 = vmatpush1.msra.mxu0 0.0
    %857 = vmatprep.subr.mxu0 0.0
    %858 = vmatpush1.msra.mxu0 0.0
    %859 = vmatprep.subr.mxu0 0.0
    %860 = vmatpush1.msra.mxu0 0.0
    %861 = vmatprep.subr.mxu0 0.0
    %862 = vmatpush1.msra.mxu0 0.0
    %863 = vmatprep.subr.mxu0 0.0
    %864 = vmatpush1.msra.mxu0 0.0
    %865 = vmatprep.subr.mxu0 0.0
    %866 = vmatpush1.msra.mxu0 0.0
    %867 = vmatprep.subr.mxu0 0.0
    %868 = vmatpush1.msra.mxu0 0.0
    %869 = vmatprep.subr.mxu0 0.0
    %870 = vmatpush1.msra.mxu0 0.0
    %871 = vmatprep.mubr.f32.mxu0 0.0
    %v872 = vand.u32 %v597, 4294901760
    %v873 = vsub.f32 %v597, %v872
    %874 = vmatmul.mubr.f32.gmra.mrb[0].mxu0 %v873
    %v875 = vpop.f32.mrb[0].mxu0
    %v876 = vadd.f32 %v788, %v875
    %v877 = vpop.f32.mrb[0].mxu0
    %v878 = vadd.f32 %v790, %v877
    %879 = vmatprep.mubr.f32.mxu0 0.0
    %v880 = vand.u32 %v600, 4294901760
    %v881 = vsub.f32 %v600, %v880
    %882 = vmatmul.mubr.f32.gmra.mrb[0].mxu0 %v881
    %v883 = vpop.f32.mrb[0].mxu0
    %v884 = vadd.f32 %v795, %v883
    %v885 = vpop.f32.mrb[0].mxu0
    %v886 = vadd.f32 %v797, %v885
    %887 = vdwg.mxu0
    %v888 = vand.u32 %v578, 4294901760
    %889 = vmatprep.subr.mxu0 %v888
    %v890 = vand.u32 %v577, 4294901760
    %891 = vmatpush1.msra.mxu0 %v890
    %v892 = vand.u32 %v607, 4294901760
    %893 = vmatprep.subr.mxu0 %v892
    %v894 = vand.u32 %v604, 4294901760
    %895 = vmatpush1.msra.mxu0 %v894
    %896 = vmatprep.subr.mxu0 0.0
    %897 = vmatpush1.msra.mxu0 0.0
    %898 = vmatprep.subr.mxu0 0.0
    %899 = vmatpush1.msra.mxu0 0.0
    %900 = vmatprep.subr.mxu0 0.0
    %901 = vmatpush1.msra.mxu0 0.0
    %902 = vmatprep.subr.mxu0 0.0
    %903 = vmatpush1.msra.mxu0 0.0
    %904 = vmatprep.subr.mxu0 0.0
    %905 = vmatpush1.msra.mxu0 0.0
    %906 = vmatprep.subr.mxu0 0.0
    %907 = vmatpush1.msra.mxu0 0.0
    %908 = vmatprep.subr.mxu0 0.0
    %909 = vmatpush1.msra.mxu0 0.0
    %910 = vmatprep.subr.mxu0 0.0
    %911 = vmatpush1.msra.mxu0 0.0
    %912 = vmatprep.subr.mxu0 0.0
    %913 = vmatpush1.msra.mxu0 0.0
    %914 = vmatprep.subr.mxu0 0.0
    %915 = vmatpush1.msra.mxu0 0.0
    %916 = vmatprep.subr.mxu0 0.0
    %917 = vmatpush1.msra.mxu0 0.0
    %918 = vmatprep.subr.mxu0 0.0
    %919 = vmatpush1.msra.mxu0 0.0
    %920 = vmatprep.subr.mxu0 0.0
    %921 = vmatpush1.msra.mxu0 0.0
    %922 = vmatprep.subr.mxu0 0.0
    %923 = vmatpush1.msra.mxu0 0.0
    %924 = vmatprep.subr.mxu0 0.0
    %925 = vmatpush1.msra.mxu0 0.0
    %926 = vmatprep.subr.mxu0 0.0
    %927 = vmatpush1.msra.mxu0 0.0
    %928 = vmatprep.subr.mxu0 0.0
    %929 = vmatpush1.msra.mxu0 0.0
    %930 = vmatprep.subr.mxu0 0.0
    %931 = vmatpush1.msra.mxu0 0.0
    %932 = vmatprep.subr.mxu0 0.0
    %933 = vmatpush1.msra.mxu0 0.0
    %934 = vmatprep.subr.mxu0 0.0
    %935 = vmatpush1.msra.mxu0 0.0
    %936 = vmatprep.subr.mxu0 0.0
    %937 = vmatpush1.msra.mxu0 0.0
    %938 = vmatprep.subr.mxu0 0.0
    %939 = vmatpush1.msra.mxu0 0.0
    %940 = vmatprep.subr.mxu0 0.0
    %941 = vmatpush1.msra.mxu0 0.0
    %942 = vmatprep.subr.mxu0 0.0
    %943 = vmatpush1.msra.mxu0 0.0
    %944 = vmatprep.subr.mxu0 0.0
    %945 = vmatpush1.msra.mxu0 0.0
    %946 = vmatprep.subr.mxu0 0.0
    %947 = vmatpush1.msra.mxu0 0.0
    %948 = vmatprep.subr.mxu0 0.0
    %949 = vmatpush1.msra.mxu0 0.0
    %950 = vmatprep.subr.mxu0 0.0
    %951 = vmatpush1.msra.mxu0 0.0
    %952 = vmatprep.subr.mxu0 0.0
    %953 = vmatpush1.msra.mxu0 0.0
    %954 = vmatprep.subr.mxu0 0.0
    %955 = vmatpush1.msra.mxu0 0.0
    %956 = vmatprep.mubr.f32.mxu0 0.0
    %v957 = vand.u32 %v597, 4294901760
    %v958 = vsub.f32 %v597, %v957
    %v959 = vand.u32 %v958, 4294901760
    %960 = vmatmul.mubr.f32.gmra.mrb[0].mxu0 %v959
    %v961 = vpop.f32.mrb[0].mxu0
    %v962 = vadd.f32 %v876, %v961
    %v963 = vpop.f32.mrb[0].mxu0
    %v964 = vadd.f32 %v878, %v963
    %965 = vmatprep.mubr.f32.mxu0 0.0
    %v966 = vand.u32 %v600, 4294901760
    %v967 = vsub.f32 %v600, %v966
    %v968 = vand.u32 %v967, 4294901760
    %969 = vmatmul.mubr.f32.gmra.mrb[0].mxu0 %v968
    %v970 = vpop.f32.mrb[0].mxu0
    %v971 = vadd.f32 %v884, %v970
    %v972 = vpop.f32.mrb[0].mxu0
    %v973 = vadd.f32 %v886, %v972
    %974 = vdwg.mxu0
    %v975 = vand.u32 %v578, 4294901760
    %v976 = vsub.f32 %v578, %v975
    %v977 = vand.u32 %v976, 4294901760
    %978 = vmatprep.subr.mxu0 %v977
    %v979 = vand.u32 %v577, 4294901760
    %v980 = vsub.f32 %v577, %v979
    %v981 = vand.u32 %v980, 4294901760
    %982 = vmatpush1.msra.mxu0 %v981
    %v983 = vand.u32 %v607, 4294901760
    %v984 = vsub.f32 %v607, %v983
    %v985 = vand.u32 %v984, 4294901760
    %986 = vmatprep.subr.mxu0 %v985
    %v987 = vand.u32 %v604, 4294901760
    %v988 = vsub.f32 %v604, %v987
    %v989 = vand.u32 %v988, 4294901760
    %990 = vmatpush1.msra.mxu0 %v989
    %991 = vmatprep.subr.mxu0 0.0
    %992 = vmatpush1.msra.mxu0 0.0
    %993 = vmatprep.subr.mxu0 0.0
    %994 = vmatpush1.msra.mxu0 0.0
    %995 = vmatprep.subr.mxu0 0.0
    %996 = vmatpush1.msra.mxu0 0.0
    %997 = vmatprep.subr.mxu0 0.0
    %998 = vmatpush1.msra.mxu0 0.0
    %999 = vmatprep.subr.mxu0 0.0
    %1000 = vmatpush1.msra.mxu0 0.0
    %1001 = vmatprep.subr.mxu0 0.0
    %1002 = vmatpush1.msra.mxu0 0.0
    %1003 = vmatprep.subr.mxu0 0.0
    %1004 = vmatpush1.msra.mxu0 0.0
    %1005 = vmatprep.subr.mxu0 0.0
    %1006 = vmatpush1.msra.mxu0 0.0
    %1007 = vmatprep.subr.mxu0 0.0
    %1008 = vmatpush1.msra.mxu0 0.0
    %1009 = vmatprep.subr.mxu0 0.0
    %1010 = vmatpush1.msra.mxu0 0.0
    %1011 = vmatprep.subr.mxu0 0.0
    %1012 = vmatpush1.msra.mxu0 0.0
    %1013 = vmatprep.subr.mxu0 0.0
    %1014 = vmatpush1.msra.mxu0 0.0
    %1015 = vmatprep.subr.mxu0 0.0
    %1016 = vmatpush1.msra.mxu0 0.0
    %1017 = vmatprep.subr.mxu0 0.0
    %1018 = vmatpush1.msra.mxu0 0.0
    %1019 = vmatprep.subr.mxu0 0.0
    %1020 = vmatpush1.msra.mxu0 0.0
    %1021 = vmatprep.subr.mxu0 0.0
    %1022 = vmatpush1.msra.mxu0 0.0
    %1023 = vmatprep.subr.mxu0 0.0
    %1024 = vmatpush1.msra.mxu0 0.0
    %1025 = vmatprep.subr.mxu0 0.0
    %1026 = vmatpush1.msra.mxu0 0.0
    %1027 = vmatprep.subr.mxu0 0.0
    %1028 = vmatpush1.msra.mxu0 0.0
    %1029 = vmatprep.subr.mxu0 0.0
    %1030 = vmatpush1.msra.mxu0 0.0
    %1031 = vmatprep.subr.mxu0 0.0
    %1032 = vmatpush1.msra.mxu0 0.0
    %1033 = vmatprep.subr.mxu0 0.0
    %1034 = vmatpush1.msra.mxu0 0.0
    %1035 = vmatprep.subr.mxu0 0.0
    %1036 = vmatpush1.msra.mxu0 0.0
    %1037 = vmatprep.subr.mxu0 0.0
    %1038 = vmatpush1.msra.mxu0 0.0
    %1039 = vmatprep.subr.mxu0 0.0
    %1040 = vmatpush1.msra.mxu0 0.0
    %1041 = vmatprep.subr.mxu0 0.0
    %1042 = vmatpush1.msra.mxu0 0.0
    %1043 = vmatprep.subr.mxu0 0.0
    %1044 = vmatpush1.msra.mxu0 0.0
    %1045 = vmatprep.subr.mxu0 0.0
    %1046 = vmatpush1.msra.mxu0 0.0
    %1047 = vmatprep.subr.mxu0 0.0
    %1048 = vmatpush1.msra.mxu0 0.0
    %1049 = vmatprep.subr.mxu0 0.0
    %1050 = vmatpush1.msra.mxu0 0.0
    %1051 = vmatprep.mubr.f32.mxu0 0.0
    %v1052 = vand.u32 %v597, 4294901760
    %1053 = vmatmul.mubr.f32.gmra.mrb[0].mxu0 %v1052
    %v1054 = vpop.f32.mrb[0].mxu0
    %v1055 = vadd.f32 %v962, %v1054
    %v1056 = vpop.f32.mrb[0].mxu0
    %v1057 = vadd.f32 %v964, %v1056
    %1058 = vmatprep.mubr.f32.mxu0 0.0
    %v1059 = vand.u32 %v600, 4294901760
    %1060 = vmatmul.mubr.f32.gmra.mrb[0].mxu0 %v1059
    %v1061 = vpop.f32.mrb[0].mxu0
    %v1062 = vadd.f32 %v971, %v1061
    %v1063 = vpop.f32.mrb[0].mxu0
    %v1064 = vadd.f32 %v973, %v1063
    %1065 = vdwg.mxu0
    %v1066 = vand.u32 %v578, 4294901760
    %1067 = vmatprep.subr.mxu0 %v1066
    %v1068 = vand.u32 %v577, 4294901760
    %1069 = vmatpush1.msra.mxu0 %v1068
    %v1070 = vand.u32 %v607, 4294901760
    %1071 = vmatprep.subr.mxu0 %v1070
    %v1072 = vand.u32 %v604, 4294901760
    %1073 = vmatpush1.msra.mxu0 %v1072
    %1074 = vmatprep.subr.mxu0 0.0
    %1075 = vmatpush1.msra.mxu0 0.0
    %1076 = vmatprep.subr.mxu0 0.0
    %1077 = vmatpush1.msra.mxu0 0.0
    %1078 = vmatprep.subr.mxu0 0.0
    %1079 = vmatpush1.msra.mxu0 0.0
    %1080 = vmatprep.subr.mxu0 0.0
    %1081 = vmatpush1.msra.mxu0 0.0
    %1082 = vmatprep.subr.mxu0 0.0
    %1083 = vmatpush1.msra.mxu0 0.0
    %1084 = vmatprep.subr.mxu0 0.0
    %1085 = vmatpush1.msra.mxu0 0.0
    %1086 = vmatprep.subr.mxu0 0.0
    %1087 = vmatpush1.msra.mxu0 0.0
    %1088 = vmatprep.subr.mxu0 0.0
    %1089 = vmatpush1.msra.mxu0 0.0
    %1090 = vmatprep.subr.mxu0 0.0
    %1091 = vmatpush1.msra.mxu0 0.0
    %1092 = vmatprep.subr.mxu0 0.0
    %1093 = vmatpush1.msra.mxu0 0.0
    %1094 = vmatprep.subr.mxu0 0.0
    %1095 = vmatpush1.msra.mxu0 0.0
    %1096 = vmatprep.subr.mxu0 0.0
    %1097 = vmatpush1.msra.mxu0 0.0
    %1098 = vmatprep.subr.mxu0 0.0
    %1099 = vmatpush1.msra.mxu0 0.0
    %1100 = vmatprep.subr.mxu0 0.0
    %1101 = vmatpush1.msra.mxu0 0.0
    %1102 = vmatprep.subr.mxu0 0.0
    %1103 = vmatpush1.msra.mxu0 0.0
    %1104 = vmatprep.subr.mxu0 0.0
    %1105 = vmatpush1.msra.mxu0 0.0
    %1106 = vmatprep.subr.mxu0 0.0
    %1107 = vmatpush1.msra.mxu0 0.0
    %1108 = vmatprep.subr.mxu0 0.0
    %1109 = vmatpush1.msra.mxu0 0.0
    %1110 = vmatprep.subr.mxu0 0.0
    %1111 = vmatpush1.msra.mxu0 0.0
    %1112 = vmatprep.subr.mxu0 0.0
    %1113 = vmatpush1.msra.mxu0 0.0
    %1114 = vmatprep.subr.mxu0 0.0
    %1115 = vmatpush1.msra.mxu0 0.0
    %1116 = vmatprep.subr.mxu0 0.0
    %1117 = vmatpush1.msra.mxu0 0.0
    %1118 = vmatprep.subr.mxu0 0.0
    %1119 = vmatpush1.msra.mxu0 0.0
    %1120 = vmatprep.subr.mxu0 0.0
    %1121 = vmatpush1.msra.mxu0 0.0
    %1122 = vmatprep.subr.mxu0 0.0
    %1123 = vmatpush1.msra.mxu0 0.0
    %1124 = vmatprep.subr.mxu0 0.0
    %1125 = vmatpush1.msra.mxu0 0.0
    %1126 = vmatprep.subr.mxu0 0.0
    %1127 = vmatpush1.msra.mxu0 0.0
    %1128 = vmatprep.subr.mxu0 0.0
    %1129 = vmatpush1.msra.mxu0 0.0
    %1130 = vmatprep.subr.mxu0 0.0
    %1131 = vmatpush1.msra.mxu0 0.0
    %1132 = vmatprep.subr.mxu0 0.0
    %1133 = vmatpush1.msra.mxu0 0.0
    %1134 = vmatprep.mubr.f32.mxu0 0.0
    %v1135 = vand.u32 %v597, 4294901760
    %1136 = vmatmul.mubr.f32.gmra.mrb[0].mxu0 %v1135
    %v1137 = vpop.f32.mrb[0].mxu0
    %v1138 = vadd.f32 %v1055, %v1137
    %v1139 = vpop.f32.mrb[0].mxu0
    %v1140 = vadd.f32 %v1057, %v1139
    %1141 = vmatprep.mubr.f32.mxu0 0.0
    %v1142 = vand.u32 %v600, 4294901760
    %1143 = vmatmul.mubr.f32.gmra.mrb[0].mxu0 %v1142
    %v1144 = vpop.f32.mrb[0].mxu0
    %v1145 = vadd.f32 %v1062, %v1144
    %v1146 = vpop.f32.mrb[0].mxu0
    %v1147 = vadd.f32 %v1064, %v1146
    %1148 = vdwg.mxu0
    %v1149 = vmax.f32 %v1138, 0.0
    %v1150 = vmax.f32 %v1140, 0.0
    %v1151 = vmax.f32 %v1145, 0.0
    %v1152 = vmax.f32 %v1147, 0.0
    %v1153 = vld [vmem:[%s5] sm:$0x7]
    %v1154 = vld [vmem:[%s6] sm:$0x7]
    %1156 = vset.pattern.permute.xlu0 0
    %1157 = vperm.xlu0 %1156, %v1154
    %v1158 = vpop.permute.xlu0 %1157
    %v1161 = vsel %vm595, %v1153, 0
    %v1164 = vsel %vm602, %v1151, 0
    %v1167 = vsel %vm602, %v1152, 0
    %v1169 = vand.u32 %v1150, 4294901760
    %1170 = vmatprep.subr.mxu0 %v1169
    %v1171 = vand.u32 %v1149, 4294901760
    %1172 = vmatpush1.msra.mxu0 %v1171
    %v1173 = vand.u32 %v1167, 4294901760
    %1174 = vmatprep.subr.mxu0 %v1173
    %v1175 = vand.u32 %v1164, 4294901760
    %1176 = vmatpush1.msra.mxu0 %v1175
    %1177 = vmatprep.subr.mxu0 0.0
    %1178 = vmatpush1.msra.mxu0 0.0
    %1179 = vmatprep.subr.mxu0 0.0
    %1180 = vmatpush1.msra.mxu0 0.0
    %1181 = vmatprep.subr.mxu0 0.0
    %1182 = vmatpush1.msra.mxu0 0.0
    %1183 = vmatprep.subr.mxu0 0.0
    %1184 = vmatpush1.msra.mxu0 0.0
    %1185 = vmatprep.subr.mxu0 0.0
    %1186 = vmatpush1.msra.mxu0 0.0
    %1187 = vmatprep.subr.mxu0 0.0
    %1188 = vmatpush1.msra.mxu0 0.0
    %1189 = vmatprep.subr.mxu0 0.0
    %1190 = vmatpush1.msra.mxu0 0.0
    %1191 = vmatprep.subr.mxu0 0.0
    %1192 = vmatpush1.msra.mxu0 0.0
    %1193 = vmatprep.subr.mxu0 0.0
    %1194 = vmatpush1.msra.mxu0 0.0
    %1195 = vmatprep.subr.mxu0 0.0
    %1196 = vmatpush1.msra.mxu0 0.0
    %1197 = vmatprep.subr.mxu0 0.0
    %1198 = vmatpush1.msra.mxu0 0.0
    %1199 = vmatprep.subr.mxu0 0.0
    %1200 = vmatpush1.msra.mxu0 0.0
    %1201 = vmatprep.subr.mxu0 0.0
    %1202 = vmatpush1.msra.mxu0 0.0
    %1203 = vmatprep.subr.mxu0 0.0
    %1204 = vmatpush1.msra.mxu0 0.0
    %1205 = vmatprep.subr.mxu0 0.0
    %1206 = vmatpush1.msra.mxu0 0.0
    %1207 = vmatprep.subr.mxu0 0.0
    %1208 = vmatpush1.msra.mxu0 0.0
    %1209 = vmatprep.subr.mxu0 0.0
    %1210 = vmatpush1.msra.mxu0 0.0
    %1211 = vmatprep.subr.mxu0 0.0
    %1212 = vmatpush1.msra.mxu0 0.0
    %1213 = vmatprep.subr.mxu0 0.0
    %1214 = vmatpush1.msra.mxu0 0.0
    %1215 = vmatprep.subr.mxu0 0.0
    %1216 = vmatpush1.msra.mxu0 0.0
    %1217 = vmatprep.subr.mxu0 0.0
    %1218 = vmatpush1.msra.mxu0 0.0
    %1219 = vmatprep.subr.mxu0 0.0
    %1220 = vmatpush1.msra.mxu0 0.0
    %1221 = vmatprep.subr.mxu0 0.0
    %1222 = vmatpush1.msra.mxu0 0.0
    %1223 = vmatprep.subr.mxu0 0.0
    %1224 = vmatpush1.msra.mxu0 0.0
    %1225 = vmatprep.subr.mxu0 0.0
    %1226 = vmatpush1.msra.mxu0 0.0
    %1227 = vmatprep.subr.mxu0 0.0
    %1228 = vmatpush1.msra.mxu0 0.0
    %1229 = vmatprep.subr.mxu0 0.0
    %1230 = vmatpush1.msra.mxu0 0.0
    %1231 = vmatprep.subr.mxu0 0.0
    %1232 = vmatpush1.msra.mxu0 0.0
    %1233 = vmatprep.subr.mxu0 0.0
    %1234 = vmatpush1.msra.mxu0 0.0
    %1235 = vmatprep.subr.mxu0 0.0
    %1236 = vmatpush1.msra.mxu0 0.0
    %1237 = vmatprep.mubr.f32.mxu0 0.0
    %v1238 = vand.u32 %v1161, 4294901760
    %v1239 = vsub.f32 %v1161, %v1238
    %v1240 = vand.u32 %v1239, 4294901760
    %v1241 = vsub.f32 %v1239, %v1240
    %v1242 = vand.u32 %v1241, 4294901760
    %1243 = vmatmul.mubr.f32.gmra.mrb[0].mxu0 %v1242
    %v1244 = vpop.f32.mrb[0].mxu0
    %v1245 = vadd.f32 %v1158, %v1244
    %v1246 = vpop.f32.mrb[0].mxu0
    %v1247 = vadd.f32 %v1158, %v1246
    %1248 = vdwg.mxu0
    %v1249 = vand.u32 %v1150, 4294901760
    %v1250 = vsub.f32 %v1150, %v1249
    %v1251 = vand.u32 %v1250, 4294901760
    %v1252 = vsub.f32 %v1250, %v1251
    %v1253 = vand.u32 %v1252, 4294901760
    %1254 = vmatprep.subr.mxu0 %v1253
    %v1255 = vand.u32 %v1149, 4294901760
    %v1256 = vsub.f32 %v1149, %v1255
    %v1257 = vand.u32 %v1256, 4294901760
    %v1258 = vsub.f32 %v1256, %v1257
    %v1259 = vand.u32 %v1258, 4294901760
    %1260 = vmatpush1.msra.mxu0 %v1259
    %v1261 = vand.u32 %v1167, 4294901760
    %v1262 = vsub.f32 %v1167, %v1261
    %v1263 = vand.u32 %v1262, 4294901760
    %v1264 = vsub.f32 %v1262, %v1263
    %v1265 = vand.u32 %v1264, 4294901760
    %1266 = vmatprep.subr.mxu0 %v1265
    %v1267 = vand.u32 %v1164, 4294901760
    %v1268 = vsub.f32 %v1164, %v1267
    %v1269 = vand.u32 %v1268, 4294901760
    %v1270 = vsub.f32 %v1268, %v1269
    %v1271 = vand.u32 %v1270, 4294901760
    %1272 = vmatpush1.msra.mxu0 %v1271
    %1273 = vmatprep.subr.mxu0 0.0
    %1274 = vmatpush1.msra.mxu0 0.0
    %1275 = vmatprep.subr.mxu0 0.0
    %1276 = vmatpush1.msra.mxu0 0.0
    %1277 = vmatprep.subr.mxu0 0.0
    %1278 = vmatpush1.msra.mxu0 0.0
    %1279 = vmatprep.subr.mxu0 0.0
    %1280 = vmatpush1.msra.mxu0 0.0
    %1281 = vmatprep.subr.mxu0 0.0
    %1282 = vmatpush1.msra.mxu0 0.0
    %1283 = vmatprep.subr.mxu0 0.0
    %1284 = vmatpush1.msra.mxu0 0.0
    %1285 = vmatprep.subr.mxu0 0.0
    %1286 = vmatpush1.msra.mxu0 0.0
    %1287 = vmatprep.subr.mxu0 0.0
    %1288 = vmatpush1.msra.mxu0 0.0
    %1289 = vmatprep.subr.mxu0 0.0
    %1290 = vmatpush1.msra.mxu0 0.0
    %1291 = vmatprep.subr.mxu0 0.0
    %1292 = vmatpush1.msra.mxu0 0.0
    %1293 = vmatprep.subr.mxu0 0.0
    %1294 = vmatpush1.msra.mxu0 0.0
    %1295 = vmatprep.subr.mxu0 0.0
    %1296 = vmatpush1.msra.mxu0 0.0
    %1297 = vmatprep.subr.mxu0 0.0
    %1298 = vmatpush1.msra.mxu0 0.0
    %1299 = vmatprep.subr.mxu0 0.0
    %1300 = vmatpush1.msra.mxu0 0.0
    %1301 = vmatprep.subr.mxu0 0.0
    %1302 = vmatpush1.msra.mxu0 0.0
    %1303 = vmatprep.subr.mxu0 0.0
    %1304 = vmatpush1.msra.mxu0 0.0
    %1305 = vmatprep.subr.mxu0 0.0
    %1306 = vmatpush1.msra.mxu0 0.0
    %1307 = vmatprep.subr.mxu0 0.0
    %1308 = vmatpush1.msra.mxu0 0.0
    %1309 = vmatprep.subr.mxu0 0.0
    %1310 = vmatpush1.msra.mxu0 0.0
    %1311 = vmatprep.subr.mxu0 0.0
    %1312 = vmatpush1.msra.mxu0 0.0
    %1313 = vmatprep.subr.mxu0 0.0
    %1314 = vmatpush1.msra.mxu0 0.0
    %1315 = vmatprep.subr.mxu0 0.0
    %1316 = vmatpush1.msra.mxu0 0.0
    %1317 = vmatprep.subr.mxu0 0.0
    %1318 = vmatpush1.msra.mxu0 0.0
    %1319 = vmatprep.subr.mxu0 0.0
    %1320 = vmatpush1.msra.mxu0 0.0
    %1321 = vmatprep.subr.mxu0 0.0
    %1322 = vmatpush1.msra.mxu0 0.0
    %1323 = vmatprep.subr.mxu0 0.0
    %1324 = vmatpush1.msra.mxu0 0.0
    %1325 = vmatprep.subr.mxu0 0.0
    %1326 = vmatpush1.msra.mxu0 0.0
    %1327 = vmatprep.subr.mxu0 0.0
    %1328 = vmatpush1.msra.mxu0 0.0
    %1329 = vmatprep.subr.mxu0 0.0
    %1330 = vmatpush1.msra.mxu0 0.0
    %1331 = vmatprep.subr.mxu0 0.0
    %1332 = vmatpush1.msra.mxu0 0.0
    %1333 = vmatprep.mubr.f32.mxu0 0.0
    %v1334 = vand.u32 %v1161, 4294901760
    %1335 = vmatmul.mubr.f32.gmra.mrb[0].mxu0 %v1334
    %v1336 = vpop.f32.mrb[0].mxu0
    %v1337 = vadd.f32 %v1245, %v1336
    %v1338 = vpop.f32.mrb[0].mxu0
    %v1339 = vadd.f32 %v1247, %v1338
    %1340 = vdwg.mxu0
    %v1341 = vand.u32 %v1150, 4294901760
    %v1342 = vsub.f32 %v1150, %v1341
    %1343 = vmatprep.subr.mxu0 %v1342
    %v1344 = vand.u32 %v1149, 4294901760
    %v1345 = vsub.f32 %v1149, %v1344
    %1346 = vmatpush1.msra.mxu0 %v1345
    %v1347 = vand.u32 %v1167, 4294901760
    %v1348 = vsub.f32 %v1167, %v1347
    %1349 = vmatprep.subr.mxu0 %v1348
    %v1350 = vand.u32 %v1164, 4294901760
    %v1351 = vsub.f32 %v1164, %v1350
    %1352 = vmatpush1.msra.mxu0 %v1351
    %1353 = vmatprep.subr.mxu0 0.0
    %1354 = vmatpush1.msra.mxu0 0.0
    %1355 = vmatprep.subr.mxu0 0.0
    %1356 = vmatpush1.msra.mxu0 0.0
    %1357 = vmatprep.subr.mxu0 0.0
    %1358 = vmatpush1.msra.mxu0 0.0
    %1359 = vmatprep.subr.mxu0 0.0
    %1360 = vmatpush1.msra.mxu0 0.0
    %1361 = vmatprep.subr.mxu0 0.0
    %1362 = vmatpush1.msra.mxu0 0.0
    %1363 = vmatprep.subr.mxu0 0.0
    %1364 = vmatpush1.msra.mxu0 0.0
    %1365 = vmatprep.subr.mxu0 0.0
    %1366 = vmatpush1.msra.mxu0 0.0
    %1367 = vmatprep.subr.mxu0 0.0
    %1368 = vmatpush1.msra.mxu0 0.0
    %1369 = vmatprep.subr.mxu0 0.0
    %1370 = vmatpush1.msra.mxu0 0.0
    %1371 = vmatprep.subr.mxu0 0.0
    %1372 = vmatpush1.msra.mxu0 0.0
    %1373 = vmatprep.subr.mxu0 0.0
    %1374 = vmatpush1.msra.mxu0 0.0
    %1375 = vmatprep.subr.mxu0 0.0
    %1376 = vmatpush1.msra.mxu0 0.0
    %1377 = vmatprep.subr.mxu0 0.0
    %1378 = vmatpush1.msra.mxu0 0.0
    %1379 = vmatprep.subr.mxu0 0.0
    %1380 = vmatpush1.msra.mxu0 0.0
    %1381 = vmatprep.subr.mxu0 0.0
    %1382 = vmatpush1.msra.mxu0 0.0
    %1383 = vmatprep.subr.mxu0 0.0
    %1384 = vmatpush1.msra.mxu0 0.0
    %1385 = vmatprep.subr.mxu0 0.0
    %1386 = vmatpush1.msra.mxu0 0.0
    %1387 = vmatprep.subr.mxu0 0.0
    %1388 = vmatpush1.msra.mxu0 0.0
    %1389 = vmatprep.subr.mxu0 0.0
    %1390 = vmatpush1.msra.mxu0 0.0
    %1391 = vmatprep.subr.mxu0 0.0
    %1392 = vmatpush1.msra.mxu0 0.0
    %1393 = vmatprep.subr.mxu0 0.0
    %1394 = vmatpush1.msra.mxu0 0.0
    %1395 = vmatprep.subr.mxu0 0.0
    %1396 = vmatpush1.msra.mxu0 0.0
    %1397 = vmatprep.subr.mxu0 0.0
    %1398 = vmatpush1.msra.mxu0 0.0
    %1399 = vmatprep.subr.mxu0 0.0
    %1400 = vmatpush1.msra.mxu0 0.0
    %1401 = vmatprep.subr.mxu0 0.0
    %1402 = vmatpush1.msra.mxu0 0.0
    %1403 = vmatprep.subr.mxu0 0.0
    %1404 = vmatpush1.msra.mxu0 0.0
    %1405 = vmatprep.subr.mxu0 0.0
    %1406 = vmatpush1.msra.mxu0 0.0
    %1407 = vmatprep.subr.mxu0 0.0
    %1408 = vmatpush1.msra.mxu0 0.0
    %1409 = vmatprep.subr.mxu0 0.0
    %1410 = vmatpush1.msra.mxu0 0.0
    %1411 = vmatprep.subr.mxu0 0.0
    %1412 = vmatpush1.msra.mxu0 0.0
    %1413 = vmatprep.mubr.f32.mxu0 0.0
    %v1414 = vand.u32 %v1161, 4294901760
    %v1415 = vsub.f32 %v1161, %v1414
    %1416 = vmatmul.mubr.f32.gmra.mrb[0].mxu0 %v1415
    %v1417 = vpop.f32.mrb[0].mxu0
    %v1418 = vadd.f32 %v1337, %v1417
    %v1419 = vpop.f32.mrb[0].mxu0
    %v1420 = vadd.f32 %v1339, %v1419
    %1421 = vdwg.mxu0
    %v1422 = vand.u32 %v1150, 4294901760
    %1423 = vmatprep.subr.mxu0 %v1422
    %v1424 = vand.u32 %v1149, 4294901760
    %1425 = vmatpush1.msra.mxu0 %v1424
    %v1426 = vand.u32 %v1167, 4294901760
    %1427 = vmatprep.subr.mxu0 %v1426
    %v1428 = vand.u32 %v1164, 4294901760
    %1429 = vmatpush1.msra.mxu0 %v1428
    %1430 = vmatprep.subr.mxu0 0.0
    %1431 = vmatpush1.msra.mxu0 0.0
    %1432 = vmatprep.subr.mxu0 0.0
    %1433 = vmatpush1.msra.mxu0 0.0
    %1434 = vmatprep.subr.mxu0 0.0
    %1435 = vmatpush1.msra.mxu0 0.0
    %1436 = vmatprep.subr.mxu0 0.0
    %1437 = vmatpush1.msra.mxu0 0.0
    %1438 = vmatprep.subr.mxu0 0.0
    %1439 = vmatpush1.msra.mxu0 0.0
    %1440 = vmatprep.subr.mxu0 0.0
    %1441 = vmatpush1.msra.mxu0 0.0
    %1442 = vmatprep.subr.mxu0 0.0
    %1443 = vmatpush1.msra.mxu0 0.0
    %1444 = vmatprep.subr.mxu0 0.0
    %1445 = vmatpush1.msra.mxu0 0.0
    %1446 = vmatprep.subr.mxu0 0.0
    %1447 = vmatpush1.msra.mxu0 0.0
    %1448 = vmatprep.subr.mxu0 0.0
    %1449 = vmatpush1.msra.mxu0 0.0
    %1450 = vmatprep.subr.mxu0 0.0
    %1451 = vmatpush1.msra.mxu0 0.0
    %1452 = vmatprep.subr.mxu0 0.0
    %1453 = vmatpush1.msra.mxu0 0.0
    %1454 = vmatprep.subr.mxu0 0.0
    %1455 = vmatpush1.msra.mxu0 0.0
    %1456 = vmatprep.subr.mxu0 0.0
    %1457 = vmatpush1.msra.mxu0 0.0
    %1458 = vmatprep.subr.mxu0 0.0
    %1459 = vmatpush1.msra.mxu0 0.0
    %1460 = vmatprep.subr.mxu0 0.0
    %1461 = vmatpush1.msra.mxu0 0.0
    %1462 = vmatprep.subr.mxu0 0.0
    %1463 = vmatpush1.msra.mxu0 0.0
    %1464 = vmatprep.subr.mxu0 0.0
    %1465 = vmatpush1.msra.mxu0 0.0
    %1466 = vmatprep.subr.mxu0 0.0
    %1467 = vmatpush1.msra.mxu0 0.0
    %1468 = vmatprep.subr.mxu0 0.0
    %1469 = vmatpush1.msra.mxu0 0.0
    %1470 = vmatprep.subr.mxu0 0.0
    %1471 = vmatpush1.msra.mxu0 0.0
    %1472 = vmatprep.subr.mxu0 0.0
    %1473 = vmatpush1.msra.mxu0 0.0
    %1474 = vmatprep.subr.mxu0 0.0
    %1475 = vmatpush1.msra.mxu0 0.0
    %1476 = vmatprep.subr.mxu0 0.0
    %1477 = vmatpush1.msra.mxu0 0.0
    %1478 = vmatprep.subr.mxu0 0.0
    %1479 = vmatpush1.msra.mxu0 0.0
    %1480 = vmatprep.subr.mxu0 0.0
    %1481 = vmatpush1.msra.mxu0 0.0
    %1482 = vmatprep.subr.mxu0 0.0
    %1483 = vmatpush1.msra.mxu0 0.0
    %1484 = vmatprep.subr.mxu0 0.0
    %1485 = vmatpush1.msra.mxu0 0.0
    %1486 = vmatprep.subr.mxu0 0.0
    %1487 = vmatpush1.msra.mxu0 0.0
    %1488 = vmatprep.subr.mxu0 0.0
    %1489 = vmatpush1.msra.mxu0 0.0
    %1490 = vmatprep.mubr.f32.mxu0 0.0
    %v1491 = vand.u32 %v1161, 4294901760
    %v1492 = vsub.f32 %v1161, %v1491
    %v1493 = vand.u32 %v1492, 4294901760
    %1494 = vmatmul.mubr.f32.gmra.mrb[0].mxu0 %v1493
    %v1495 = vpop.f32.mrb[0].mxu0
    %v1496 = vadd.f32 %v1418, %v1495
    %v1497 = vpop.f32.mrb[0].mxu0
    %v1498 = vadd.f32 %v1420, %v1497
    %1499 = vdwg.mxu0
    %v1500 = vand.u32 %v1150, 4294901760
    %v1501 = vsub.f32 %v1150, %v1500
    %v1502 = vand.u32 %v1501, 4294901760
    %1503 = vmatprep.subr.mxu0 %v1502
    %v1504 = vand.u32 %v1149, 4294901760
    %v1505 = vsub.f32 %v1149, %v1504
    %v1506 = vand.u32 %v1505, 4294901760
    %1507 = vmatpush1.msra.mxu0 %v1506
    %v1508 = vand.u32 %v1167, 4294901760
    %v1509 = vsub.f32 %v1167, %v1508
    %v1510 = vand.u32 %v1509, 4294901760
    %1511 = vmatprep.subr.mxu0 %v1510
    %v1512 = vand.u32 %v1164, 4294901760
    %v1513 = vsub.f32 %v1164, %v1512
    %v1514 = vand.u32 %v1513, 4294901760
    %1515 = vmatpush1.msra.mxu0 %v1514
    %1516 = vmatprep.subr.mxu0 0.0
    %1517 = vmatpush1.msra.mxu0 0.0
    %1518 = vmatprep.subr.mxu0 0.0
    %1519 = vmatpush1.msra.mxu0 0.0
    %1520 = vmatprep.subr.mxu0 0.0
    %1521 = vmatpush1.msra.mxu0 0.0
    %1522 = vmatprep.subr.mxu0 0.0
    %1523 = vmatpush1.msra.mxu0 0.0
    %1524 = vmatprep.subr.mxu0 0.0
    %1525 = vmatpush1.msra.mxu0 0.0
    %1526 = vmatprep.subr.mxu0 0.0
    %1527 = vmatpush1.msra.mxu0 0.0
    %1528 = vmatprep.subr.mxu0 0.0
    %1529 = vmatpush1.msra.mxu0 0.0
    %1530 = vmatprep.subr.mxu0 0.0
    %1531 = vmatpush1.msra.mxu0 0.0
    %1532 = vmatprep.subr.mxu0 0.0
    %1533 = vmatpush1.msra.mxu0 0.0
    %1534 = vmatprep.subr.mxu0 0.0
    %1535 = vmatpush1.msra.mxu0 0.0
    %1536 = vmatprep.subr.mxu0 0.0
    %1537 = vmatpush1.msra.mxu0 0.0
    %1538 = vmatprep.subr.mxu0 0.0
    %1539 = vmatpush1.msra.mxu0 0.0
    %1540 = vmatprep.subr.mxu0 0.0
    %1541 = vmatpush1.msra.mxu0 0.0
    %1542 = vmatprep.subr.mxu0 0.0
    %1543 = vmatpush1.msra.mxu0 0.0
    %1544 = vmatprep.subr.mxu0 0.0
    %1545 = vmatpush1.msra.mxu0 0.0
    %1546 = vmatprep.subr.mxu0 0.0
    %1547 = vmatpush1.msra.mxu0 0.0
    %1548 = vmatprep.subr.mxu0 0.0
    %1549 = vmatpush1.msra.mxu0 0.0
    %1550 = vmatprep.subr.mxu0 0.0
    %1551 = vmatpush1.msra.mxu0 0.0
    %1552 = vmatprep.subr.mxu0 0.0
    %1553 = vmatpush1.msra.mxu0 0.0
    %1554 = vmatprep.subr.mxu0 0.0
    %1555 = vmatpush1.msra.mxu0 0.0
    %1556 = vmatprep.subr.mxu0 0.0
    %1557 = vmatpush1.msra.mxu0 0.0
    %1558 = vmatprep.subr.mxu0 0.0
    %1559 = vmatpush1.msra.mxu0 0.0
    %1560 = vmatprep.subr.mxu0 0.0
    %1561 = vmatpush1.msra.mxu0 0.0
    %1562 = vmatprep.subr.mxu0 0.0
    %1563 = vmatpush1.msra.mxu0 0.0
    %1564 = vmatprep.subr.mxu0 0.0
    %1565 = vmatpush1.msra.mxu0 0.0
    %1566 = vmatprep.subr.mxu0 0.0
    %1567 = vmatpush1.msra.mxu0 0.0
    %1568 = vmatprep.subr.mxu0 0.0
    %1569 = vmatpush1.msra.mxu0 0.0
    %1570 = vmatprep.subr.mxu0 0.0
    %1571 = vmatpush1.msra.mxu0 0.0
    %1572 = vmatprep.subr.mxu0 0.0
    %1573 = vmatpush1.msra.mxu0 0.0
    %1574 = vmatprep.subr.mxu0 0.0
    %1575 = vmatpush1.msra.mxu0 0.0
    %1576 = vmatprep.mubr.f32.mxu0 0.0
    %v1577 = vand.u32 %v1161, 4294901760
    %1578 = vmatmul.mubr.f32.gmra.mrb[0].mxu0 %v1577
    %v1579 = vpop.f32.mrb[0].mxu0
    %v1580 = vadd.f32 %v1496, %v1579
    %v1581 = vpop.f32.mrb[0].mxu0
    %v1582 = vadd.f32 %v1498, %v1581
    %1583 = vdwg.mxu0
    %v1584 = vand.u32 %v1150, 4294901760
    %1585 = vmatprep.subr.mxu0 %v1584
    %v1586 = vand.u32 %v1149, 4294901760
    %1587 = vmatpush1.msra.mxu0 %v1586
    %v1588 = vand.u32 %v1167, 4294901760
    %1589 = vmatprep.subr.mxu0 %v1588
    %v1590 = vand.u32 %v1164, 4294901760
    %1591 = vmatpush1.msra.mxu0 %v1590
    %1592 = vmatprep.subr.mxu0 0.0
    %1593 = vmatpush1.msra.mxu0 0.0
    %1594 = vmatprep.subr.mxu0 0.0
    %1595 = vmatpush1.msra.mxu0 0.0
    %1596 = vmatprep.subr.mxu0 0.0
    %1597 = vmatpush1.msra.mxu0 0.0
    %1598 = vmatprep.subr.mxu0 0.0
    %1599 = vmatpush1.msra.mxu0 0.0
    %1600 = vmatprep.subr.mxu0 0.0
    %1601 = vmatpush1.msra.mxu0 0.0
    %1602 = vmatprep.subr.mxu0 0.0
    %1603 = vmatpush1.msra.mxu0 0.0
    %1604 = vmatprep.subr.mxu0 0.0
    %1605 = vmatpush1.msra.mxu0 0.0
    %1606 = vmatprep.subr.mxu0 0.0
    %1607 = vmatpush1.msra.mxu0 0.0
    %1608 = vmatprep.subr.mxu0 0.0
    %1609 = vmatpush1.msra.mxu0 0.0
    %1610 = vmatprep.subr.mxu0 0.0
    %1611 = vmatpush1.msra.mxu0 0.0
    %1612 = vmatprep.subr.mxu0 0.0
    %1613 = vmatpush1.msra.mxu0 0.0
    %1614 = vmatprep.subr.mxu0 0.0
    %1615 = vmatpush1.msra.mxu0 0.0
    %1616 = vmatprep.subr.mxu0 0.0
    %1617 = vmatpush1.msra.mxu0 0.0
    %1618 = vmatprep.subr.mxu0 0.0
    %1619 = vmatpush1.msra.mxu0 0.0
    %1620 = vmatprep.subr.mxu0 0.0
    %1621 = vmatpush1.msra.mxu0 0.0
    %1622 = vmatprep.subr.mxu0 0.0
    %1623 = vmatpush1.msra.mxu0 0.0
    %1624 = vmatprep.subr.mxu0 0.0
    %1625 = vmatpush1.msra.mxu0 0.0
    %1626 = vmatprep.subr.mxu0 0.0
    %1627 = vmatpush1.msra.mxu0 0.0
    %1628 = vmatprep.subr.mxu0 0.0
    %1629 = vmatpush1.msra.mxu0 0.0
    %1630 = vmatprep.subr.mxu0 0.0
    %1631 = vmatpush1.msra.mxu0 0.0
    %1632 = vmatprep.subr.mxu0 0.0
    %1633 = vmatpush1.msra.mxu0 0.0
    %1634 = vmatprep.subr.mxu0 0.0
    %1635 = vmatpush1.msra.mxu0 0.0
    %1636 = vmatprep.subr.mxu0 0.0
    %1637 = vmatpush1.msra.mxu0 0.0
    %1638 = vmatprep.subr.mxu0 0.0
    %1639 = vmatpush1.msra.mxu0 0.0
    %1640 = vmatprep.subr.mxu0 0.0
    %1641 = vmatpush1.msra.mxu0 0.0
    %1642 = vmatprep.subr.mxu0 0.0
    %1643 = vmatpush1.msra.mxu0 0.0
    %1644 = vmatprep.subr.mxu0 0.0
    %1645 = vmatpush1.msra.mxu0 0.0
    %1646 = vmatprep.subr.mxu0 0.0
    %1647 = vmatpush1.msra.mxu0 0.0
    %1648 = vmatprep.subr.mxu0 0.0
    %1649 = vmatpush1.msra.mxu0 0.0
    %1650 = vmatprep.subr.mxu0 0.0
    %1651 = vmatpush1.msra.mxu0 0.0
    %1652 = vmatprep.mubr.f32.mxu0 0.0
    %v1653 = vand.u32 %v1161, 4294901760
    %1654 = vmatmul.mubr.f32.gmra.mrb[0].mxu0 %v1653
    %v1655 = vpop.f32.mrb[0].mxu0
    %v1656 = vadd.f32 %v1580, %v1655
    %v1657 = vpop.f32.mrb[0].mxu0
    %v1658 = vadd.f32 %v1582, %v1657
    %1659 = vdwg.mxu0
    %vm1660 = vcmask 1042432
    %v1661 = vsel %vm1660, %v1656, -inf
    %v1662 = vrot.slane %v1661, 4
    %v1663 = vmax.f32 %v1661, %v1662
    %v1664 = vrot.slane %v1663, 2
    %v1665 = vmax.f32 %v1663, %v1664
    %v1666 = vrot.slane %v1665, 1
    %v1667 = vmax.f32 %v1665, %v1666
    %v1668 = vsel %vm1660, %v1658, -inf
    %v1669 = vrot.slane %v1668, 4
    %v1670 = vmax.f32 %v1668, %v1669
    %v1671 = vrot.slane %v1670, 2
    %v1672 = vmax.f32 %v1670, %v1671
    %v1673 = vrot.slane %v1672, 1
    %v1674 = vmax.f32 %v1672, %v1673
    %v1675 = vsub.f32 %v1656, %v1667
    %v1676 = vsub.f32 %v1658, %v1674
    %v1677 = vmul.f32 %v1675, 1.442695
    %v1678 = vpow.pop %v1677
    %v1679 = vmul.f32 %v1676, 1.442695
    %v1680 = vpow.pop %v1679
    %v1681 = vsel %vm1660, %v1678, 0.0
    %v1682 = vrot.slane %v1681, 4
    %v1683 = vadd.f32 %v1681, %v1682
    %v1684 = vrot.slane %v1683, 2
    %v1685 = vadd.f32 %v1683, %v1684
    %v1686 = vrot.slane %v1685, 1
    %v1687 = vadd.f32 %v1685, %v1686
    %v1688 = vsel %vm1660, %v1680, 0.0
    %v1689 = vrot.slane %v1688, 4
    %v1690 = vadd.f32 %v1688, %v1689
    %v1691 = vrot.slane %v1690, 2
    %v1692 = vadd.f32 %v1690, %v1691
    %v1693 = vrot.slane %v1692, 1
    %v1694 = vadd.f32 %v1692, %v1693
    %v1695 = vrcp.pop %v1687
    %v1696 = vrcp.pop %v1694
    %v1697 = vmul.f32 %v1687, %v1695
    %v1698 = vmul.f32 %v1694, %v1696
    %v1699 = vsub.f32 2.0, %v1697
    %v1700 = vsub.f32 2.0, %v1698
    %v1701 = vmul.f32 %v1695, %v1699
    %v1702 = vmul.f32 %v1696, %v1700
    %v1703 = vmul.f32 %v1678, %v1701
    %v1704 = vmul.f32 %v1680, %v1702
    %v1707 = vcombine.low %v1703, %v1704
    %1709 = vst [vmem:[#allocation2] sm:$0x77] %v1707
    %s1710 = scalar_lea.vmem %s5, 4
    %v1711 = vld [vmem:[%s1710] sm:$0x7]
    %s1712 = scalar_lea.vmem %s6, 4
    %v1713 = vld [vmem:[%s1712] sm:$0x7]
    %1715 = vset.pattern.permute.xlu0 0
    %1716 = vperm.xlu0 %1715, %v1713
    %v1717 = vpop.permute.xlu0 %1716
    %v1720 = vsel %vm595, %v1711, 0
    %v1722 = vand.u32 %v1150, 4294901760
    %1723 = vmatprep.subr.mxu0 %v1722
    %v1724 = vand.u32 %v1149, 4294901760
    %1725 = vmatpush1.msra.mxu0 %v1724
    %v1726 = vand.u32 %v1167, 4294901760
    %1727 = vmatprep.subr.mxu0 %v1726
    %v1728 = vand.u32 %v1164, 4294901760
    %1729 = vmatpush1.msra.mxu0 %v1728
    %1730 = vmatprep.subr.mxu0 0.0
    %1731 = vmatpush1.msra.mxu0 0.0
    %1732 = vmatprep.subr.mxu0 0.0
    %1733 = vmatpush1.msra.mxu0 0.0
    %1734 = vmatprep.subr.mxu0 0.0
    %1735 = vmatpush1.msra.mxu0 0.0
    %1736 = vmatprep.subr.mxu0 0.0
    %1737 = vmatpush1.msra.mxu0 0.0
    %1738 = vmatprep.subr.mxu0 0.0
    %1739 = vmatpush1.msra.mxu0 0.0
    %1740 = vmatprep.subr.mxu0 0.0
    %1741 = vmatpush1.msra.mxu0 0.0
    %1742 = vmatprep.subr.mxu0 0.0
    %1743 = vmatpush1.msra.mxu0 0.0
    %1744 = vmatprep.subr.mxu0 0.0
    %1745 = vmatpush1.msra.mxu0 0.0
    %1746 = vmatprep.subr.mxu0 0.0
    %1747 = vmatpush1.msra.mxu0 0.0
    %1748 = vmatprep.subr.mxu0 0.0
    %1749 = vmatpush1.msra.mxu0 0.0
    %1750 = vmatprep.subr.mxu0 0.0
    %1751 = vmatpush1.msra.mxu0 0.0
    %1752 = vmatprep.subr.mxu0 0.0
    %1753 = vmatpush1.msra.mxu0 0.0
    %1754 = vmatprep.subr.mxu0 0.0
    %1755 = vmatpush1.msra.mxu0 0.0
    %1756 = vmatprep.subr.mxu0 0.0
    %1757 = vmatpush1.msra.mxu0 0.0
    %1758 = vmatprep.subr.mxu0 0.0
    %1759 = vmatpush1.msra.mxu0 0.0
    %1760 = vmatprep.subr.mxu0 0.0
    %1761 = vmatpush1.msra.mxu0 0.0
    %1762 = vmatprep.subr.mxu0 0.0
    %1763 = vmatpush1.msra.mxu0 0.0
    %1764 = vmatprep.subr.mxu0 0.0
    %1765 = vmatpush1.msra.mxu0 0.0
    %1766 = vmatprep.subr.mxu0 0.0
    %1767 = vmatpush1.msra.mxu0 0.0
    %1768 = vmatprep.subr.mxu0 0.0
    %1769 = vmatpush1.msra.mxu0 0.0
    %1770 = vmatprep.subr.mxu0 0.0
    %1771 = vmatpush1.msra.mxu0 0.0
    %1772 = vmatprep.subr.mxu0 0.0
    %1773 = vmatpush1.msra.mxu0 0.0
    %1774 = vmatprep.subr.mxu0 0.0
    %1775 = vmatpush1.msra.mxu0 0.0
    %1776 = vmatprep.subr.mxu0 0.0
    %1777 = vmatpush1.msra.mxu0 0.0
    %1778 = vmatprep.subr.mxu0 0.0
    %1779 = vmatpush1.msra.mxu0 0.0
    %1780 = vmatprep.subr.mxu0 0.0
    %1781 = vmatpush1.msra.mxu0 0.0
    %1782 = vmatprep.subr.mxu0 0.0
    %1783 = vmatpush1.msra.mxu0 0.0
    %1784 = vmatprep.subr.mxu0 0.0
    %1785 = vmatpush1.msra.mxu0 0.0
    %1786 = vmatprep.subr.mxu0 0.0
    %1787 = vmatpush1.msra.mxu0 0.0
    %1788 = vmatprep.subr.mxu0 0.0
    %1789 = vmatpush1.msra.mxu0 0.0
    %1790 = vmatprep.mubr.f32.mxu0 0.0
    %v1791 = vand.u32 %v1720, 4294901760
    %v1792 = vsub.f32 %v1720, %v1791
    %v1793 = vand.u32 %v1792, 4294901760
    %v1794 = vsub.f32 %v1792, %v1793
    %v1795 = vand.u32 %v1794, 4294901760
    %1796 = vmatmul.mubr.f32.gmra.mrb[0].mxu0 %v1795
    %v1797 = vpop.f32.mrb[0].mxu0
    %v1798 = vadd.f32 %v1717, %v1797
    %v1799 = vpop.f32.mrb[0].mxu0
    %v1800 = vadd.f32 %v1717, %v1799
    %1801 = vdwg.mxu0
    %v1802 = vand.u32 %v1150, 4294901760
    %v1803 = vsub.f32 %v1150, %v1802
    %v1804 = vand.u32 %v1803, 4294901760
    %v1805 = vsub.f32 %v1803, %v1804
    %v1806 = vand.u32 %v1805, 4294901760
    %1807 = vmatprep.subr.mxu0 %v1806
    %v1808 = vand.u32 %v1149, 4294901760
    %v1809 = vsub.f32 %v1149, %v1808
    %v1810 = vand.u32 %v1809, 4294901760
    %v1811 = vsub.f32 %v1809, %v1810
    %v1812 = vand.u32 %v1811, 4294901760
    %1813 = vmatpush1.msra.mxu0 %v1812
    %v1814 = vand.u32 %v1167, 4294901760
    %v1815 = vsub.f32 %v1167, %v1814
    %v1816 = vand.u32 %v1815, 4294901760
    %v1817 = vsub.f32 %v1815, %v1816
    %v1818 = vand.u32 %v1817, 4294901760
    %1819 = vmatprep.subr.mxu0 %v1818
    %v1820 = vand.u32 %v1164, 4294901760
    %v1821 = vsub.f32 %v1164, %v1820
    %v1822 = vand.u32 %v1821, 4294901760
    %v1823 = vsub.f32 %v1821, %v1822
    %v1824 = vand.u32 %v1823, 4294901760
    %1825 = vmatpush1.msra.mxu0 %v1824
    %1826 = vmatprep.subr.mxu0 0.0
    %1827 = vmatpush1.msra.mxu0 0.0
    %1828 = vmatprep.subr.mxu0 0.0
    %1829 = vmatpush1.msra.mxu0 0.0
    %1830 = vmatprep.subr.mxu0 0.0
    %1831 = vmatpush1.msra.mxu0 0.0
    %1832 = vmatprep.subr.mxu0 0.0
    %1833 = vmatpush1.msra.mxu0 0.0
    %1834 = vmatprep.subr.mxu0 0.0
    %1835 = vmatpush1.msra.mxu0 0.0
    %1836 = vmatprep.subr.mxu0 0.0
    %1837 = vmatpush1.msra.mxu0 0.0
    %1838 = vmatprep.subr.mxu0 0.0
    %1839 = vmatpush1.msra.mxu0 0.0
    %1840 = vmatprep.subr.mxu0 0.0
    %1841 = vmatpush1.msra.mxu0 0.0
    %1842 = vmatprep.subr.mxu0 0.0
    %1843 = vmatpush1.msra.mxu0 0.0
    %1844 = vmatprep.subr.mxu0 0.0
    %1845 = vmatpush1.msra.mxu0 0.0
    %1846 = vmatprep.subr.mxu0 0.0
    %1847 = vmatpush1.msra.mxu0 0.0
    %1848 = vmatprep.subr.mxu0 0.0
    %1849 = vmatpush1.msra.mxu0 0.0
    %1850 = vmatprep.subr.mxu0 0.0
    %1851 = vmatpush1.msra.mxu0 0.0
    %1852 = vmatprep.subr.mxu0 0.0
    %1853 = vmatpush1.msra.mxu0 0.0
    %1854 = vmatprep.subr.mxu0 0.0
    %1855 = vmatpush1.msra.mxu0 0.0
    %1856 = vmatprep.subr.mxu0 0.0
    %1857 = vmatpush1.msra.mxu0 0.0
    %1858 = vmatprep.subr.mxu0 0.0
    %1859 = vmatpush1.msra.mxu0 0.0
    %1860 = vmatprep.subr.mxu0 0.0
    %1861 = vmatpush1.msra.mxu0 0.0
    %1862 = vmatprep.subr.mxu0 0.0
    %1863 = vmatpush1.msra.mxu0 0.0
    %1864 = vmatprep.subr.mxu0 0.0
    %1865 = vmatpush1.msra.mxu0 0.0
    %1866 = vmatprep.subr.mxu0 0.0
    %1867 = vmatpush1.msra.mxu0 0.0
    %1868 = vmatprep.subr.mxu0 0.0
    %1869 = vmatpush1.msra.mxu0 0.0
    %1870 = vmatprep.subr.mxu0 0.0
    %1871 = vmatpush1.msra.mxu0 0.0
    %1872 = vmatprep.subr.mxu0 0.0
    %1873 = vmatpush1.msra.mxu0 0.0
    %1874 = vmatprep.subr.mxu0 0.0
    %1875 = vmatpush1.msra.mxu0 0.0
    %1876 = vmatprep.subr.mxu0 0.0
    %1877 = vmatpush1.msra.mxu0 0.0
    %1878 = vmatprep.subr.mxu0 0.0
    %1879 = vmatpush1.msra.mxu0 0.0
    %1880 = vmatprep.subr.mxu0 0.0
    %1881 = vmatpush1.msra.mxu0 0.0
    %1882 = vmatprep.subr.mxu0 0.0
    %1883 = vmatpush1.msra.mxu0 0.0
    %1884 = vmatprep.subr.mxu0 0.0
    %1885 = vmatpush1.msra.mxu0 0.0
    %1886 = vmatprep.mubr.f32.mxu0 0.0
    %v1887 = vand.u32 %v1720, 4294901760
    %1888 = vmatmul.mubr.f32.gmra.mrb[0].mxu0 %v1887
    %v1889 = vpop.f32.mrb[0].mxu0
    %v1890 = vadd.f32 %v1798, %v1889
    %v1891 = vpop.f32.mrb[0].mxu0
    %v1892 = vadd.f32 %v1800, %v1891
    %1893 = vdwg.mxu0
    %v1894 = vand.u32 %v1150, 4294901760
    %v1895 = vsub.f32 %v1150, %v1894
    %1896 = vmatprep.subr.mxu0 %v1895
    %v1897 = vand.u32 %v1149, 4294901760
    %v1898 = vsub.f32 %v1149, %v1897
    %1899 = vmatpush1.msra.mxu0 %v1898
    %v1900 = vand.u32 %v1167, 4294901760
    %v1901 = vsub.f32 %v1167, %v1900
    %1902 = vmatprep.subr.mxu0 %v1901
    %v1903 = vand.u32 %v1164, 4294901760
    %v1904 = vsub.f32 %v1164, %v1903
    %1905 = vmatpush1.msra.mxu0 %v1904
    %1906 = vmatprep.subr.mxu0 0.0
    %1907 = vmatpush1.msra.mxu0 0.0
    %1908 = vmatprep.subr.mxu0 0.0
    %1909 = vmatpush1.msra.mxu0 0.0
    %1910 = vmatprep.subr.mxu0 0.0
    %1911 = vmatpush1.msra.mxu0 0.0
    %1912 = vmatprep.subr.mxu0 0.0
    %1913 = vmatpush1.msra.mxu0 0.0
    %1914 = vmatprep.subr.mxu0 0.0
    %1915 = vmatpush1.msra.mxu0 0.0
    %1916 = vmatprep.subr.mxu0 0.0
    %1917 = vmatpush1.msra.mxu0 0.0
    %1918 = vmatprep.subr.mxu0 0.0
    %1919 = vmatpush1.msra.mxu0 0.0
    %1920 = vmatprep.subr.mxu0 0.0
    %1921 = vmatpush1.msra.mxu0 0.0
    %1922 = vmatprep.subr.mxu0 0.0
    %1923 = vmatpush1.msra.mxu0 0.0
    %1924 = vmatprep.subr.mxu0 0.0
    %1925 = vmatpush1.msra.mxu0 0.0
    %1926 = vmatprep.subr.mxu0 0.0
    %1927 = vmatpush1.msra.mxu0 0.0
    %1928 = vmatprep.subr.mxu0 0.0
    %1929 = vmatpush1.msra.mxu0 0.0
    %1930 = vmatprep.subr.mxu0 0.0
    %1931 = vmatpush1.msra.mxu0 0.0
    %1932 = vmatprep.subr.mxu0 0.0
    %1933 = vmatpush1.msra.mxu0 0.0
    %1934 = vmatprep.subr.mxu0 0.0
    %1935 = vmatpush1.msra.mxu0 0.0
    %1936 = vmatprep.subr.mxu0 0.0
    %1937 = vmatpush1.msra.mxu0 0.0
    %1938 = vmatprep.subr.mxu0 0.0
    %1939 = vmatpush1.msra.mxu0 0.0
    %1940 = vmatprep.subr.mxu0 0.0
    %1941 = vmatpush1.msra.mxu0 0.0
    %1942 = vmatprep.subr.mxu0 0.0
    %1943 = vmatpush1.msra.mxu0 0.0
    %1944 = vmatprep.subr.mxu0 0.0
    %1945 = vmatpush1.msra.mxu0 0.0
    %1946 = vmatprep.subr.mxu0 0.0
    %1947 = vmatpush1.msra.mxu0 0.0
    %1948 = vmatprep.subr.mxu0 0.0
    %1949 = vmatpush1.msra.mxu0 0.0
    %1950 = vmatprep.subr.mxu0 0.0
    %1951 = vmatpush1.msra.mxu0 0.0
    %1952 = vmatprep.subr.mxu0 0.0
    %1953 = vmatpush1.msra.mxu0 0.0
    %1954 = vmatprep.subr.mxu0 0.0
    %1955 = vmatpush1.msra.mxu0 0.0
    %1956 = vmatprep.subr.mxu0 0.0
    %1957 = vmatpush1.msra.mxu0 0.0
    %1958 = vmatprep.subr.mxu0 0.0
    %1959 = vmatpush1.msra.mxu0 0.0
    %1960 = vmatprep.subr.mxu0 0.0
    %1961 = vmatpush1.msra.mxu0 0.0
    %1962 = vmatprep.subr.mxu0 0.0
    %1963 = vmatpush1.msra.mxu0 0.0
    %1964 = vmatprep.subr.mxu0 0.0
    %1965 = vmatpush1.msra.mxu0 0.0
    %1966 = vmatprep.mubr.f32.mxu0 0.0
    %v1967 = vand.u32 %v1720, 4294901760
    %v1968 = vsub.f32 %v1720, %v1967
    %1969 = vmatmul.mubr.f32.gmra.mrb[0].mxu0 %v1968
    %v1970 = vpop.f32.mrb[0].mxu0
    %v1971 = vadd.f32 %v1890, %v1970
    %v1972 = vpop.f32.mrb[0].mxu0
    %v1973 = vadd.f32 %v1892, %v1972
    %1974 = vdwg.mxu0
    %v1975 = vand.u32 %v1150, 4294901760
    %1976 = vmatprep.subr.mxu0 %v1975
    %v1977 = vand.u32 %v1149, 4294901760
    %1978 = vmatpush1.msra.mxu0 %v1977
    %v1979 = vand.u32 %v1167, 4294901760
    %1980 = vmatprep.subr.mxu0 %v1979
    %v1981 = vand.u32 %v1164, 4294901760
    %1982 = vmatpush1.msra.mxu0 %v1981
    %1983 = vmatprep.subr.mxu0 0.0
    %1984 = vmatpush1.msra.mxu0 0.0
    %1985 = vmatprep.subr.mxu0 0.0
    %1986 = vmatpush1.msra.mxu0 0.0
    %1987 = vmatprep.subr.mxu0 0.0
    %1988 = vmatpush1.msra.mxu0 0.0
    %1989 = vmatprep.subr.mxu0 0.0
    %1990 = vmatpush1.msra.mxu0 0.0
    %1991 = vmatprep.subr.mxu0 0.0
    %1992 = vmatpush1.msra.mxu0 0.0
    %1993 = vmatprep.subr.mxu0 0.0
    %1994 = vmatpush1.msra.mxu0 0.0
    %1995 = vmatprep.subr.mxu0 0.0
    %1996 = vmatpush1.msra.mxu0 0.0
    %1997 = vmatprep.subr.mxu0 0.0
    %1998 = vmatpush1.msra.mxu0 0.0
    %1999 = vmatprep.subr.mxu0 0.0
    %2000 = vmatpush1.msra.mxu0 0.0
    %2001 = vmatprep.subr.mxu0 0.0
    %2002 = vmatpush1.msra.mxu0 0.0
    %2003 = vmatprep.subr.mxu0 0.0
    %2004 = vmatpush1.msra.mxu0 0.0
    %2005 = vmatprep.subr.mxu0 0.0
    %2006 = vmatpush1.msra.mxu0 0.0
    %2007 = vmatprep.subr.mxu0 0.0
    %2008 = vmatpush1.msra.mxu0 0.0
    %2009 = vmatprep.subr.mxu0 0.0
    %2010 = vmatpush1.msra.mxu0 0.0
    %2011 = vmatprep.subr.mxu0 0.0
    %2012 = vmatpush1.msra.mxu0 0.0
    %2013 = vmatprep.subr.mxu0 0.0
    %2014 = vmatpush1.msra.mxu0 0.0
    %2015 = vmatprep.subr.mxu0 0.0
    %2016 = vmatpush1.msra.mxu0 0.0
    %2017 = vmatprep.subr.mxu0 0.0
    %2018 = vmatpush1.msra.mxu0 0.0
    %2019 = vmatprep.subr.mxu0 0.0
    %2020 = vmatpush1.msra.mxu0 0.0
    %2021 = vmatprep.subr.mxu0 0.0
    %2022 = vmatpush1.msra.mxu0 0.0
    %2023 = vmatprep.subr.mxu0 0.0
    %2024 = vmatpush1.msra.mxu0 0.0
    %2025 = vmatprep.subr.mxu0 0.0
    %2026 = vmatpush1.msra.mxu0 0.0
    %2027 = vmatprep.subr.mxu0 0.0
    %2028 = vmatpush1.msra.mxu0 0.0
    %2029 = vmatprep.subr.mxu0 0.0
    %2030 = vmatpush1.msra.mxu0 0.0
    %2031 = vmatprep.subr.mxu0 0.0
    %2032 = vmatpush1.msra.mxu0 0.0
    %2033 = vmatprep.subr.mxu0 0.0
    %2034 = vmatpush1.msra.mxu0 0.0
    %2035 = vmatprep.subr.mxu0 0.0
    %2036 = vmatpush1.msra.mxu0 0.0
    %2037 = vmatprep.subr.mxu0 0.0
    %2038 = vmatpush1.msra.mxu0 0.0
    %2039 = vmatprep.subr.mxu0 0.0
    %2040 = vmatpush1.msra.mxu0 0.0
    %2041 = vmatprep.subr.mxu0 0.0
    %2042 = vmatpush1.msra.mxu0 0.0
    %2043 = vmatprep.mubr.f32.mxu0 0.0
    %v2044 = vand.u32 %v1720, 4294901760
    %v2045 = vsub.f32 %v1720, %v2044
    %v2046 = vand.u32 %v2045, 4294901760
    %2047 = vmatmul.mubr.f32.gmra.mrb[0].mxu0 %v2046
    %v2048 = vpop.f32.mrb[0].mxu0
    %v2049 = vadd.f32 %v1971, %v2048
    %v2050 = vpop.f32.mrb[0].mxu0
    %v2051 = vadd.f32 %v1973, %v2050
    %2052 = vdwg.mxu0
    %v2053 = vand.u32 %v1150, 4294901760
    %v2054 = vsub.f32 %v1150, %v2053
    %v2055 = vand.u32 %v2054, 4294901760
    %2056 = vmatprep.subr.mxu0 %v2055
    %v2057 = vand.u32 %v1149, 4294901760
    %v2058 = vsub.f32 %v1149, %v2057
    %v2059 = vand.u32 %v2058, 4294901760
    %2060 = vmatpush1.msra.mxu0 %v2059
    %v2061 = vand.u32 %v1167, 4294901760
    %v2062 = vsub.f32 %v1167, %v2061
    %v2063 = vand.u32 %v2062, 4294901760
    %2064 = vmatprep.subr.mxu0 %v2063
    %v2065 = vand.u32 %v1164, 4294901760
    %v2066 = vsub.f32 %v1164, %v2065
    %v2067 = vand.u32 %v2066, 4294901760
    %2068 = vmatpush1.msra.mxu0 %v2067
    %2069 = vmatprep.subr.mxu0 0.0
    %2070 = vmatpush1.msra.mxu0 0.0
    %2071 = vmatprep.subr.mxu0 0.0
    %2072 = vmatpush1.msra.mxu0 0.0
    %2073 = vmatprep.subr.mxu0 0.0
    %2074 = vmatpush1.msra.mxu0 0.0
    %2075 = vmatprep.subr.mxu0 0.0
    %2076 = vmatpush1.msra.mxu0 0.0
    %2077 = vmatprep.subr.mxu0 0.0
    %2078 = vmatpush1.msra.mxu0 0.0
    %2079 = vmatprep.subr.mxu0 0.0
    %2080 = vmatpush1.msra.mxu0 0.0
    %2081 = vmatprep.subr.mxu0 0.0
    %2082 = vmatpush1.msra.mxu0 0.0
    %2083 = vmatprep.subr.mxu0 0.0
    %2084 = vmatpush1.msra.mxu0 0.0
    %2085 = vmatprep.subr.mxu0 0.0
    %2086 = vmatpush1.msra.mxu0 0.0
    %2087 = vmatprep.subr.mxu0 0.0
    %2088 = vmatpush1.msra.mxu0 0.0
    %2089 = vmatprep.subr.mxu0 0.0
    %2090 = vmatpush1.msra.mxu0 0.0
    %2091 = vmatprep.subr.mxu0 0.0
    %2092 = vmatpush1.msra.mxu0 0.0
    %2093 = vmatprep.subr.mxu0 0.0
    %2094 = vmatpush1.msra.mxu0 0.0
    %2095 = vmatprep.subr.mxu0 0.0
    %2096 = vmatpush1.msra.mxu0 0.0
    %2097 = vmatprep.subr.mxu0 0.0
    %2098 = vmatpush1.msra.mxu0 0.0
    %2099 = vmatprep.subr.mxu0 0.0
    %2100 = vmatpush1.msra.mxu0 0.0
    %2101 = vmatprep.subr.mxu0 0.0
    %2102 = vmatpush1.msra.mxu0 0.0
    %2103 = vmatprep.subr.mxu0 0.0
    %2104 = vmatpush1.msra.mxu0 0.0
    %2105 = vmatprep.subr.mxu0 0.0
    %2106 = vmatpush1.msra.mxu0 0.0
    %2107 = vmatprep.subr.mxu0 0.0
    %2108 = vmatpush1.msra.mxu0 0.0
    %2109 = vmatprep.subr.mxu0 0.0
    %2110 = vmatpush1.msra.mxu0 0.0
    %2111 = vmatprep.subr.mxu0 0.0
    %2112 = vmatpush1.msra.mxu0 0.0
    %2113 = vmatprep.subr.mxu0 0.0
    %2114 = vmatpush1.msra.mxu0 0.0
    %2115 = vmatprep.subr.mxu0 0.0
    %2116 = vmatpush1.msra.mxu0 0.0
    %2117 = vmatprep.subr.mxu0 0.0
    %2118 = vmatpush1.msra.mxu0 0.0
    %2119 = vmatprep.subr.mxu0 0.0
    %2120 = vmatpush1.msra.mxu0 0.0
    %2121 = vmatprep.subr.mxu0 0.0
    %2122 = vmatpush1.msra.mxu0 0.0
    %2123 = vmatprep.subr.mxu0 0.0
    %2124 = vmatpush1.msra.mxu0 0.0
    %2125 = vmatprep.subr.mxu0 0.0
    %2126 = vmatpush1.msra.mxu0 0.0
    %2127 = vmatprep.subr.mxu0 0.0
    %2128 = vmatpush1.msra.mxu0 0.0
    %2129 = vmatprep.mubr.f32.mxu0 0.0
    %v2130 = vand.u32 %v1720, 4294901760
    %2131 = vmatmul.mubr.f32.gmra.mrb[0].mxu0 %v2130
    %v2132 = vpop.f32.mrb[0].mxu0
    %v2133 = vadd.f32 %v2049, %v2132
    %v2134 = vpop.f32.mrb[0].mxu0
    %v2135 = vadd.f32 %v2051, %v2134
    %2136 = vdwg.mxu0
    %v2137 = vand.u32 %v1150, 4294901760
    %2138 = vmatprep.subr.mxu0 %v2137
    %v2139 = vand.u32 %v1149, 4294901760
    %2140 = vmatpush1.msra.mxu0 %v2139
    %v2141 = vand.u32 %v1167, 4294901760
    %2142 = vmatprep.subr.mxu0 %v2141
    %v2143 = vand.u32 %v1164, 4294901760
    %2144 = vmatpush1.msra.mxu0 %v2143
    %2145 = vmatprep.subr.mxu0 0.0
    %2146 = vmatpush1.msra.mxu0 0.0
    %2147 = vmatprep.subr.mxu0 0.0
    %2148 = vmatpush1.msra.mxu0 0.0
    %2149 = vmatprep.subr.mxu0 0.0
    %2150 = vmatpush1.msra.mxu0 0.0
    %2151 = vmatprep.subr.mxu0 0.0
    %2152 = vmatpush1.msra.mxu0 0.0
    %2153 = vmatprep.subr.mxu0 0.0
    %2154 = vmatpush1.msra.mxu0 0.0
    %2155 = vmatprep.subr.mxu0 0.0
    %2156 = vmatpush1.msra.mxu0 0.0
    %2157 = vmatprep.subr.mxu0 0.0
    %2158 = vmatpush1.msra.mxu0 0.0
    %2159 = vmatprep.subr.mxu0 0.0
    %2160 = vmatpush1.msra.mxu0 0.0
    %2161 = vmatprep.subr.mxu0 0.0
    %2162 = vmatpush1.msra.mxu0 0.0
    %2163 = vmatprep.subr.mxu0 0.0
    %2164 = vmatpush1.msra.mxu0 0.0
    %2165 = vmatprep.subr.mxu0 0.0
    %2166 = vmatpush1.msra.mxu0 0.0
    %2167 = vmatprep.subr.mxu0 0.0
    %2168 = vmatpush1.msra.mxu0 0.0
    %2169 = vmatprep.subr.mxu0 0.0
    %2170 = vmatpush1.msra.mxu0 0.0
    %2171 = vmatprep.subr.mxu0 0.0
    %2172 = vmatpush1.msra.mxu0 0.0
    %2173 = vmatprep.subr.mxu0 0.0
    %2174 = vmatpush1.msra.mxu0 0.0
    %2175 = vmatprep.subr.mxu0 0.0
    %2176 = vmatpush1.msra.mxu0 0.0
    %2177 = vmatprep.subr.mxu0 0.0
    %2178 = vmatpush1.msra.mxu0 0.0
    %2179 = vmatprep.subr.mxu0 0.0
    %2180 = vmatpush1.msra.mxu0 0.0
    %2181 = vmatprep.subr.mxu0 0.0
    %2182 = vmatpush1.msra.mxu0 0.0
    %2183 = vmatprep.subr.mxu0 0.0
    %2184 = vmatpush1.msra.mxu0 0.0
    %2185 = vmatprep.subr.mxu0 0.0
    %2186 = vmatpush1.msra.mxu0 0.0
    %2187 = vmatprep.subr.mxu0 0.0
    %2188 = vmatpush1.msra.mxu0 0.0
    %2189 = vmatprep.subr.mxu0 0.0
    %2190 = vmatpush1.msra.mxu0 0.0
    %2191 = vmatprep.subr.mxu0 0.0
    %2192 = vmatpush1.msra.mxu0 0.0
    %2193 = vmatprep.subr.mxu0 0.0
    %2194 = vmatpush1.msra.mxu0 0.0
    %2195 = vmatprep.subr.mxu0 0.0
    %2196 = vmatpush1.msra.mxu0 0.0
    %2197 = vmatprep.subr.mxu0 0.0
    %2198 = vmatpush1.msra.mxu0 0.0
    %2199 = vmatprep.subr.mxu0 0.0
    %2200 = vmatpush1.msra.mxu0 0.0
    %2201 = vmatprep.subr.mxu0 0.0
    %2202 = vmatpush1.msra.mxu0 0.0
    %2203 = vmatprep.subr.mxu0 0.0
    %2204 = vmatpush1.msra.mxu0 0.0
    %2205 = vmatprep.mubr.f32.mxu0 0.0
    %v2206 = vand.u32 %v1720, 4294901760
    %2207 = vmatmul.mubr.f32.gmra.mrb[0].mxu0 %v2206
    %v2208 = vpop.f32.mrb[0].mxu0
    %v2209 = vadd.f32 %v2133, %v2208
    %v2210 = vpop.f32.mrb[0].mxu0
    %v2211 = vadd.f32 %v2135, %v2210
    %2212 = vdwg.mxu0
    %v2213 = vsel %vm1660, %v2209, -inf
    %v2214 = vrot.slane %v2213, 4
    %v2215 = vmax.f32 %v2213, %v2214
    %v2216 = vrot.slane %v2215, 2
    %v2217 = vmax.f32 %v2215, %v2216
    %v2218 = vrot.slane %v2217, 1
    %v2219 = vmax.f32 %v2217, %v2218
    %v2220 = vsel %vm1660, %v2211, -inf
    %v2221 = vrot.slane %v2220, 4
    %v2222 = vmax.f32 %v2220, %v2221
    %v2223 = vrot.slane %v2222, 2
    %v2224 = vmax.f32 %v2222, %v2223
    %v2225 = vrot.slane %v2224, 1
    %v2226 = vmax.f32 %v2224, %v2225
    %v2227 = vsub.f32 %v2209, %v2219
    %v2228 = vsub.f32 %v2211, %v2226
    %v2229 = vmul.f32 %v2227, 1.442695
    %v2230 = vpow.pop %v2229
    %v2231 = vmul.f32 %v2228, 1.442695
    %v2232 = vpow.pop %v2231
    %v2233 = vsel %vm1660, %v2230, 0.0
    %v2234 = vrot.slane %v2233, 4
    %v2235 = vadd.f32 %v2233, %v2234
    %v2236 = vrot.slane %v2235, 2
    %v2237 = vadd.f32 %v2235, %v2236
    %v2238 = vrot.slane %v2237, 1
    %v2239 = vadd.f32 %v2237, %v2238
    %v2240 = vsel %vm1660, %v2232, 0.0
    %v2241 = vrot.slane %v2240, 4
    %v2242 = vadd.f32 %v2240, %v2241
    %v2243 = vrot.slane %v2242, 2
    %v2244 = vadd.f32 %v2242, %v2243
    %v2245 = vrot.slane %v2244, 1
    %v2246 = vadd.f32 %v2244, %v2245
    %v2247 = vrcp.pop %v2239
    %v2248 = vrcp.pop %v2246
    %v2249 = vmul.f32 %v2239, %v2247
    %v2250 = vmul.f32 %v2246, %v2248
    %v2251 = vsub.f32 2.0, %v2249
    %v2252 = vsub.f32 2.0, %v2250
    %v2253 = vmul.f32 %v2247, %v2251
    %v2254 = vmul.f32 %v2248, %v2252
    %v2255 = vmul.f32 %v2230, %v2253
    %v2256 = vmul.f32 %v2232, %v2254
    %v2259 = vcombine.low %v2255, %v2256
    %s2261 = scalar_lea.vmem [#allocation2], 8
    %2262 = vst [vmem:[%s2261] sm:$0x77] %v2259
    %s2263 = scalar_lea.vmem %s5, 8
    %v2264 = vld [vmem:[%s2263] sm:$0x7]
    %s2265 = scalar_lea.vmem %s6, 8
    %v2266 = vld [vmem:[%s2265] sm:$0x7]
    %2268 = vset.pattern.permute.xlu0 0
    %2269 = vperm.xlu0 %2268, %v2266
    %v2270 = vpop.permute.xlu0 %2269
    %v2273 = vsel %vm595, %v2264, 0
    %v2275 = vand.u32 %v1150, 4294901760
    %2276 = vmatprep.subr.mxu0 %v2275
    %v2277 = vand.u32 %v1149, 4294901760
    %2278 = vmatpush1.msra.mxu0 %v2277
    %v2279 = vand.u32 %v1167, 4294901760
    %2280 = vmatprep.subr.mxu0 %v2279
    %v2281 = vand.u32 %v1164, 4294901760
    %2282 = vmatpush1.msra.mxu0 %v2281
    %2283 = vmatprep.subr.mxu0 0.0
    %2284 = vmatpush1.msra.mxu0 0.0
    %2285 = vmatprep.subr.mxu0 0.0
    %2286 = vmatpush1.msra.mxu0 0.0
    %2287 = vmatprep.subr.mxu0 0.0
    %2288 = vmatpush1.msra.mxu0 0.0
    %2289 = vmatprep.subr.mxu0 0.0
    %2290 = vmatpush1.msra.mxu0 0.0
    %2291 = vmatprep.subr.mxu0 0.0
    %2292 = vmatpush1.msra.mxu0 0.0
    %2293 = vmatprep.subr.mxu0 0.0
    %2294 = vmatpush1.msra.mxu0 0.0
    %2295 = vmatprep.subr.mxu0 0.0
    %2296 = vmatpush1.msra.mxu0 0.0
    %2297 = vmatprep.subr.mxu0 0.0
    %2298 = vmatpush1.msra.mxu0 0.0
    %2299 = vmatprep.subr.mxu0 0.0
    %2300 = vmatpush1.msra.mxu0 0.0
    %2301 = vmatprep.subr.mxu0 0.0
    %2302 = vmatpush1.msra.mxu0 0.0
    %2303 = vmatprep.subr.mxu0 0.0
    %2304 = vmatpush1.msra.mxu0 0.0
    %2305 = vmatprep.subr.mxu0 0.0
    %2306 = vmatpush1.msra.mxu0 0.0
    %2307 = vmatprep.subr.mxu0 0.0
    %2308 = vmatpush1.msra.mxu0 0.0
    %2309 = vmatprep.subr.mxu0 0.0
    %2310 = vmatpush1.msra.mxu0 0.0
    %2311 = vmatprep.subr.mxu0 0.0
    %2312 = vmatpush1.msra.mxu0 0.0
    %2313 = vmatprep.subr.mxu0 0.0
    %2314 = vmatpush1.msra.mxu0 0.0
    %2315 = vmatprep.subr.mxu0 0.0
    %2316 = vmatpush1.msra.mxu0 0.0
    %2317 = vmatprep.subr.mxu0 0.0
    %2318 = vmatpush1.msra.mxu0 0.0
    %2319 = vmatprep.subr.mxu0 0.0
    %2320 = vmatpush1.msra.mxu0 0.0
    %2321 = vmatprep.subr.mxu0 0.0
    %2322 = vmatpush1.msra.mxu0 0.0
    %2323 = vmatprep.subr.mxu0 0.0
    %2324 = vmatpush1.msra.mxu0 0.0
    %2325 = vmatprep.subr.mxu0 0.0
    %2326 = vmatpush1.msra.mxu0 0.0
    %2327 = vmatprep.subr.mxu0 0.0
    %2328 = vmatpush1.msra.mxu0 0.0
    %2329 = vmatprep.subr.mxu0 0.0
    %2330 = vmatpush1.msra.mxu0 0.0
    %2331 = vmatprep.subr.mxu0 0.0
    %2332 = vmatpush1.msra.mxu0 0.0
    %2333 = vmatprep.subr.mxu0 0.0
    %2334 = vmatpush1.msra.mxu0 0.0
    %2335 = vmatprep.subr.mxu0 0.0
    %2336 = vmatpush1.msra.mxu0 0.0
    %2337 = vmatprep.subr.mxu0 0.0
    %2338 = vmatpush1.msra.mxu0 0.0
    %2339 = vmatprep.subr.mxu0 0.0
    %2340 = vmatpush1.msra.mxu0 0.0
    %2341 = vmatprep.subr.mxu0 0.0
    %2342 = vmatpush1.msra.mxu0 0.0
    %2343 = vmatprep.mubr.f32.mxu0 0.0
    %v2344 = vand.u32 %v2273, 4294901760
    %v2345 = vsub.f32 %v2273, %v2344
    %v2346 = vand.u32 %v2345, 4294901760
    %v2347 = vsub.f32 %v2345, %v2346
    %v2348 = vand.u32 %v2347, 4294901760
    %2349 = vmatmul.mubr.f32.gmra.mrb[0].mxu0 %v2348
    %v2350 = vpop.f32.mrb[0].mxu0
    %v2351 = vadd.f32 %v2270, %v2350
    %v2352 = vpop.f32.mrb[0].mxu0
    %v2353 = vadd.f32 %v2270, %v2352
    %2354 = vdwg.mxu0
    %v2355 = vand.u32 %v1150, 4294901760
    %v2356 = vsub.f32 %v1150, %v2355
    %v2357 = vand.u32 %v2356, 4294901760
    %v2358 = vsub.f32 %v2356, %v2357
    %v2359 = vand.u32 %v2358, 4294901760
    %2360 = vmatprep.subr.mxu0 %v2359
    %v2361 = vand.u32 %v1149, 4294901760
    %v2362 = vsub.f32 %v1149, %v2361
    %v2363 = vand.u32 %v2362, 4294901760
    %v2364 = vsub.f32 %v2362, %v2363
    %v2365 = vand.u32 %v2364, 4294901760
    %2366 = vmatpush1.msra.mxu0 %v2365
    %v2367 = vand.u32 %v1167, 4294901760
    %v2368 = vsub.f32 %v1167, %v2367
    %v2369 = vand.u32 %v2368, 4294901760
    %v2370 = vsub.f32 %v2368, %v2369
    %v2371 = vand.u32 %v2370, 4294901760
    %2372 = vmatprep.subr.mxu0 %v2371
    %v2373 = vand.u32 %v1164, 4294901760
    %v2374 = vsub.f32 %v1164, %v2373
    %v2375 = vand.u32 %v2374, 4294901760
    %v2376 = vsub.f32 %v2374, %v2375
    %v2377 = vand.u32 %v2376, 4294901760
    %2378 = vmatpush1.msra.mxu0 %v2377
    %2379 = vmatprep.subr.mxu0 0.0
    %2380 = vmatpush1.msra.mxu0 0.0
    %2381 = vmatprep.subr.mxu0 0.0
    %2382 = vmatpush1.msra.mxu0 0.0
    %2383 = vmatprep.subr.mxu0 0.0
    %2384 = vmatpush1.msra.mxu0 0.0
    %2385 = vmatprep.subr.mxu0 0.0
    %2386 = vmatpush1.msra.mxu0 0.0
    %2387 = vmatprep.subr.mxu0 0.0
    %2388 = vmatpush1.msra.mxu0 0.0
    %2389 = vmatprep.subr.mxu0 0.0
    %2390 = vmatpush1.msra.mxu0 0.0
    %2391 = vmatprep.subr.mxu0 0.0
    %2392 = vmatpush1.msra.mxu0 0.0
    %2393 = vmatprep.subr.mxu0 0.0
    %2394 = vmatpush1.msra.mxu0 0.0
    %2395 = vmatprep.subr.mxu0 0.0
    %2396 = vmatpush1.msra.mxu0 0.0
    %2397 = vmatprep.subr.mxu0 0.0
    %2398 = vmatpush1.msra.mxu0 0.0
    %2399 = vmatprep.subr.mxu0 0.0
    %2400 = vmatpush1.msra.mxu0 0.0
    %2401 = vmatprep.subr.mxu0 0.0
    %2402 = vmatpush1.msra.mxu0 0.0
    %2403 = vmatprep.subr.mxu0 0.0
    %2404 = vmatpush1.msra.mxu0 0.0
    %2405 = vmatprep.subr.mxu0 0.0
    %2406 = vmatpush1.msra.mxu0 0.0
    %2407 = vmatprep.subr.mxu0 0.0
    %2408 = vmatpush1.msra.mxu0 0.0
    %2409 = vmatprep.subr.mxu0 0.0
    %2410 = vmatpush1.msra.mxu0 0.0
    %2411 = vmatprep.subr.mxu0 0.0
    %2412 = vmatpush1.msra.mxu0 0.0
    %2413 = vmatprep.subr.mxu0 0.0
    %2414 = vmatpush1.msra.mxu0 0.0
    %2415 = vmatprep.subr.mxu0 0.0
    %2416 = vmatpush1.msra.mxu0 0.0
    %2417 = vmatprep.subr.mxu0 0.0
    %2418 = vmatpush1.msra.mxu0 0.0
    %2419 = vmatprep.subr.mxu0 0.0
    %2420 = vmatpush1.msra.mxu0 0.0
    %2421 = vmatprep.subr.mxu0 0.0
    %2422 = vmatpush1.msra.mxu0 0.0
    %2423 = vmatprep.subr.mxu0 0.0
    %2424 = vmatpush1.msra.mxu0 0.0
    %2425 = vmatprep.subr.mxu0 0.0
    %2426 = vmatpush1.msra.mxu0 0.0
    %2427 = vmatprep.subr.mxu0 0.0
    %2428 = vmatpush1.msra.mxu0 0.0
    %2429 = vmatprep.subr.mxu0 0.0
    %2430 = vmatpush1.msra.mxu0 0.0
    %2431 = vmatprep.subr.mxu0 0.0
    %2432 = vmatpush1.msra.mxu0 0.0
    %2433 = vmatprep.subr.mxu0 0.0
    %2434 = vmatpush1.msra.mxu0 0.0
    %2435 = vmatprep.subr.mxu0 0.0
    %2436 = vmatpush1.msra.mxu0 0.0
    %2437 = vmatprep.subr.mxu0 0.0
    %2438 = vmatpush1.msra.mxu0 0.0
    %2439 = vmatprep.mubr.f32.mxu0 0.0
    %v2440 = vand.u32 %v2273, 4294901760
    %2441 = vmatmul.mubr.f32.gmra.mrb[0].mxu0 %v2440
    %v2442 = vpop.f32.mrb[0].mxu0
    %v2443 = vadd.f32 %v2351, %v2442
    %v2444 = vpop.f32.mrb[0].mxu0
    %v2445 = vadd.f32 %v2353, %v2444
    %2446 = vdwg.mxu0
    %v2447 = vand.u32 %v1150, 4294901760
    %v2448 = vsub.f32 %v1150, %v2447
    %2449 = vmatprep.subr.mxu0 %v2448
    %v2450 = vand.u32 %v1149, 4294901760
    %v2451 = vsub.f32 %v1149, %v2450
    %2452 = vmatpush1.msra.mxu0 %v2451
    %v2453 = vand.u32 %v1167, 4294901760
    %v2454 = vsub.f32 %v1167, %v2453
    %2455 = vmatprep.subr.mxu0 %v2454
    %v2456 = vand.u32 %v1164, 4294901760
    %v2457 = vsub.f32 %v1164, %v2456
    %2458 = vmatpush1.msra.mxu0 %v2457
    %2459 = vmatprep.subr.mxu0 0.0
    %2460 = vmatpush1.msra.mxu0 0.0
    %2461 = vmatprep.subr.mxu0 0.0
    %2462 = vmatpush1.msra.mxu0 0.0
    %2463 = vmatprep.subr.mxu0 0.0
    %2464 = vmatpush1.msra.mxu0 0.0
    %2465 = vmatprep.subr.mxu0 0.0
    %2466 = vmatpush1.msra.mxu0 0.0
    %2467 = vmatprep.subr.mxu0 0.0
    %2468 = vmatpush1.msra.mxu0 0.0
    %2469 = vmatprep.subr.mxu0 0.0
    %2470 = vmatpush1.msra.mxu0 0.0
    %2471 = vmatprep.subr.mxu0 0.0
    %2472 = vmatpush1.msra.mxu0 0.0
    %2473 = vmatprep.subr.mxu0 0.0
    %2474 = vmatpush1.msra.mxu0 0.0
    %2475 = vmatprep.subr.mxu0 0.0
    %2476 = vmatpush1.msra.mxu0 0.0
    %2477 = vmatprep.subr.mxu0 0.0
    %2478 = vmatpush1.msra.mxu0 0.0
    %2479 = vmatprep.subr.mxu0 0.0
    %2480 = vmatpush1.msra.mxu0 0.0
    %2481 = vmatprep.subr.mxu0 0.0
    %2482 = vmatpush1.msra.mxu0 0.0
    %2483 = vmatprep.subr.mxu0 0.0
    %2484 = vmatpush1.msra.mxu0 0.0
    %2485 = vmatprep.subr.mxu0 0.0
    %2486 = vmatpush1.msra.mxu0 0.0
    %2487 = vmatprep.subr.mxu0 0.0
    %2488 = vmatpush1.msra.mxu0 0.0
    %2489 = vmatprep.subr.mxu0 0.0
    %2490 = vmatpush1.msra.mxu0 0.0
    %2491 = vmatprep.subr.mxu0 0.0
    %2492 = vmatpush1.msra.mxu0 0.0
    %2493 = vmatprep.subr.mxu0 0.0
    %2494 = vmatpush1.msra.mxu0 0.0
    %2495 = vmatprep.subr.mxu0 0.0
    %2496 = vmatpush1.msra.mxu0 0.0
    %2497 = vmatprep.subr.mxu0 0.0
    %2498 = vmatpush1.msra.mxu0 0.0
    %2499 = vmatprep.subr.mxu0 0.0
    %2500 = vmatpush1.msra.mxu0 0.0
    %2501 = vmatprep.subr.mxu0 0.0
    %2502 = vmatpush1.msra.mxu0 0.0
    %2503 = vmatprep.subr.mxu0 0.0
    %2504 = vmatpush1.msra.mxu0 0.0
    %2505 = vmatprep.subr.mxu0 0.0
    %2506 = vmatpush1.msra.mxu0 0.0
    %2507 = vmatprep.subr.mxu0 0.0
    %2508 = vmatpush1.msra.mxu0 0.0
    %2509 = vmatprep.subr.mxu0 0.0
    %2510 = vmatpush1.msra.mxu0 0.0
    %2511 = vmatprep.subr.mxu0 0.0
    %2512 = vmatpush1.msra.mxu0 0.0
    %2513 = vmatprep.subr.mxu0 0.0
    %2514 = vmatpush1.msra.mxu0 0.0
    %2515 = vmatprep.subr.mxu0 0.0
    %2516 = vmatpush1.msra.mxu0 0.0
    %2517 = vmatprep.subr.mxu0 0.0
    %2518 = vmatpush1.msra.mxu0 0.0
    %2519 = vmatprep.mubr.f32.mxu0 0.0
    %v2520 = vand.u32 %v2273, 4294901760
    %v2521 = vsub.f32 %v2273, %v2520
    %2522 = vmatmul.mubr.f32.gmra.mrb[0].mxu0 %v2521
    %v2523 = vpop.f32.mrb[0].mxu0
    %v2524 = vadd.f32 %v2443, %v2523
    %v2525 = vpop.f32.mrb[0].mxu0
    %v2526 = vadd.f32 %v2445, %v2525
    %2527 = vdwg.mxu0
    %v2528 = vand.u32 %v1150, 4294901760
    %2529 = vmatprep.subr.mxu0 %v2528
    %v2530 = vand.u32 %v1149, 4294901760
    %2531 = vmatpush1.msra.mxu0 %v2530
    %v2532 = vand.u32 %v1167, 4294901760
    %2533 = vmatprep.subr.mxu0 %v2532
    %v2534 = vand.u32 %v1164, 4294901760
    %2535 = vmatpush1.msra.mxu0 %v2534
    %2536 = vmatprep.subr.mxu0 0.0
    %2537 = vmatpush1.msra.mxu0 0.0
    %2538 = vmatprep.subr.mxu0 0.0
    %2539 = vmatpush1.msra.mxu0 0.0
    %2540 = vmatprep.subr.mxu0 0.0
    %2541 = vmatpush1.msra.mxu0 0.0
    %2542 = vmatprep.subr.mxu0 0.0
    %2543 = vmatpush1.msra.mxu0 0.0
    %2544 = vmatprep.subr.mxu0 0.0
    %2545 = vmatpush1.msra.mxu0 0.0
    %2546 = vmatprep.subr.mxu0 0.0
    %2547 = vmatpush1.msra.mxu0 0.0
    %2548 = vmatprep.subr.mxu0 0.0
    %2549 = vmatpush1.msra.mxu0 0.0
    %2550 = vmatprep.subr.mxu0 0.0
    %2551 = vmatpush1.msra.mxu0 0.0
    %2552 = vmatprep.subr.mxu0 0.0
    %2553 = vmatpush1.msra.mxu0 0.0
    %2554 = vmatprep.subr.mxu0 0.0
    %2555 = vmatpush1.msra.mxu0 0.0
    %2556 = vmatprep.subr.mxu0 0.0
    %2557 = vmatpush1.msra.mxu0 0.0
    %2558 = vmatprep.subr.mxu0 0.0
    %2559 = vmatpush1.msra.mxu0 0.0
    %2560 = vmatprep.subr.mxu0 0.0
    %2561 = vmatpush1.msra.mxu0 0.0
    %2562 = vmatprep.subr.mxu0 0.0
    %2563 = vmatpush1.msra.mxu0 0.0
    %2564 = vmatprep.subr.mxu0 0.0
    %2565 = vmatpush1.msra.mxu0 0.0
    %2566 = vmatprep.subr.mxu0 0.0
    %2567 = vmatpush1.msra.mxu0 0.0
    %2568 = vmatprep.subr.mxu0 0.0
    %2569 = vmatpush1.msra.mxu0 0.0
    %2570 = vmatprep.subr.mxu0 0.0
    %2571 = vmatpush1.msra.mxu0 0.0
    %2572 = vmatprep.subr.mxu0 0.0
    %2573 = vmatpush1.msra.mxu0 0.0
    %2574 = vmatprep.subr.mxu0 0.0
    %2575 = vmatpush1.msra.mxu0 0.0
    %2576 = vmatprep.subr.mxu0 0.0
    %2577 = vmatpush1.msra.mxu0 0.0
    %2578 = vmatprep.subr.mxu0 0.0
    %2579 = vmatpush1.msra.mxu0 0.0
    %2580 = vmatprep.subr.mxu0 0.0
    %2581 = vmatpush1.msra.mxu0 0.0
    %2582 = vmatprep.subr.mxu0 0.0
    %2583 = vmatpush1.msra.mxu0 0.0
    %2584 = vmatprep.subr.mxu0 0.0
    %2585 = vmatpush1.msra.mxu0 0.0
    %2586 = vmatprep.subr.mxu0 0.0
    %2587 = vmatpush1.msra.mxu0 0.0
    %2588 = vmatprep.subr.mxu0 0.0
    %2589 = vmatpush1.msra.mxu0 0.0
    %2590 = vmatprep.subr.mxu0 0.0
    %2591 = vmatpush1.msra.mxu0 0.0
    %2592 = vmatprep.subr.mxu0 0.0
    %2593 = vmatpush1.msra.mxu0 0.0
    %2594 = vmatprep.subr.mxu0 0.0
    %2595 = vmatpush1.msra.mxu0 0.0
    %2596 = vmatprep.mubr.f32.mxu0 0.0
    %v2597 = vand.u32 %v2273, 4294901760
    %v2598 = vsub.f32 %v2273, %v2597
    %v2599 = vand.u32 %v2598, 4294901760
    %2600 = vmatmul.mubr.f32.gmra.mrb[0].mxu0 %v2599
    %v2601 = vpop.f32.mrb[0].mxu0
    %v2602 = vadd.f32 %v2524, %v2601
    %v2603 = vpop.f32.mrb[0].mxu0
    %v2604 = vadd.f32 %v2526, %v2603
    %2605 = vdwg.mxu0
    %v2606 = vand.u32 %v1150, 4294901760
    %v2607 = vsub.f32 %v1150, %v2606
    %v2608 = vand.u32 %v2607, 4294901760
    %2609 = vmatprep.subr.mxu0 %v2608
    %v2610 = vand.u32 %v1149, 4294901760
    %v2611 = vsub.f32 %v1149, %v2610
    %v2612 = vand.u32 %v2611, 4294901760
    %2613 = vmatpush1.msra.mxu0 %v2612
    %v2614 = vand.u32 %v1167, 4294901760
    %v2615 = vsub.f32 %v1167, %v2614
    %v2616 = vand.u32 %v2615, 4294901760
    %2617 = vmatprep.subr.mxu0 %v2616
    %v2618 = vand.u32 %v1164, 4294901760
    %v2619 = vsub.f32 %v1164, %v2618
    %v2620 = vand.u32 %v2619, 4294901760
    %2621 = vmatpush1.msra.mxu0 %v2620
    %2622 = vmatprep.subr.mxu0 0.0
    %2623 = vmatpush1.msra.mxu0 0.0
    %2624 = vmatprep.subr.mxu0 0.0
    %2625 = vmatpush1.msra.mxu0 0.0
    %2626 = vmatprep.subr.mxu0 0.0
    %2627 = vmatpush1.msra.mxu0 0.0
    %2628 = vmatprep.subr.mxu0 0.0
    %2629 = vmatpush1.msra.mxu0 0.0
    %2630 = vmatprep.subr.mxu0 0.0
    %2631 = vmatpush1.msra.mxu0 0.0
    %2632 = vmatprep.subr.mxu0 0.0
    %2633 = vmatpush1.msra.mxu0 0.0
    %2634 = vmatprep.subr.mxu0 0.0
    %2635 = vmatpush1.msra.mxu0 0.0
    %2636 = vmatprep.subr.mxu0 0.0
    %2637 = vmatpush1.msra.mxu0 0.0
    %2638 = vmatprep.subr.mxu0 0.0
    %2639 = vmatpush1.msra.mxu0 0.0
    %2640 = vmatprep.subr.mxu0 0.0
    %2641 = vmatpush1.msra.mxu0 0.0
    %2642 = vmatprep.subr.mxu0 0.0
    %2643 = vmatpush1.msra.mxu0 0.0
    %2644 = vmatprep.subr.mxu0 0.0
    %2645 = vmatpush1.msra.mxu0 0.0
    %2646 = vmatprep.subr.mxu0 0.0
    %2647 = vmatpush1.msra.mxu0 0.0
    %2648 = vmatprep.subr.mxu0 0.0
    %2649 = vmatpush1.msra.mxu0 0.0
    %2650 = vmatprep.subr.mxu0 0.0
    %2651 = vmatpush1.msra.mxu0 0.0
    %2652 = vmatprep.subr.mxu0 0.0
    %2653 = vmatpush1.msra.mxu0 0.0
    %2654 = vmatprep.subr.mxu0 0.0
    %2655 = vmatpush1.msra.mxu0 0.0
    %2656 = vmatprep.subr.mxu0 0.0
    %2657 = vmatpush1.msra.mxu0 0.0
    %2658 = vmatprep.subr.mxu0 0.0
    %2659 = vmatpush1.msra.mxu0 0.0
    %2660 = vmatprep.subr.mxu0 0.0
    %2661 = vmatpush1.msra.mxu0 0.0
    %2662 = vmatprep.subr.mxu0 0.0
    %2663 = vmatpush1.msra.mxu0 0.0
    %2664 = vmatprep.subr.mxu0 0.0
    %2665 = vmatpush1.msra.mxu0 0.0
    %2666 = vmatprep.subr.mxu0 0.0
    %2667 = vmatpush1.msra.mxu0 0.0
    %2668 = vmatprep.subr.mxu0 0.0
    %2669 = vmatpush1.msra.mxu0 0.0
    %2670 = vmatprep.subr.mxu0 0.0
    %2671 = vmatpush1.msra.mxu0 0.0
    %2672 = vmatprep.subr.mxu0 0.0
    %2673 = vmatpush1.msra.mxu0 0.0
    %2674 = vmatprep.subr.mxu0 0.0
    %2675 = vmatpush1.msra.mxu0 0.0
    %2676 = vmatprep.subr.mxu0 0.0
    %2677 = vmatpush1.msra.mxu0 0.0
    %2678 = vmatprep.subr.mxu0 0.0
    %2679 = vmatpush1.msra.mxu0 0.0
    %2680 = vmatprep.subr.mxu0 0.0
    %2681 = vmatpush1.msra.mxu0 0.0
    %2682 = vmatprep.mubr.f32.mxu0 0.0
    %v2683 = vand.u32 %v2273, 4294901760
    %2684 = vmatmul.mubr.f32.gmra.mrb[0].mxu0 %v2683
    %v2685 = vpop.f32.mrb[0].mxu0
    %v2686 = vadd.f32 %v2602, %v2685
    %v2687 = vpop.f32.mrb[0].mxu0
    %v2688 = vadd.f32 %v2604, %v2687
    %2689 = vdwg.mxu0
    %v2690 = vand.u32 %v1150, 4294901760
    %2691 = vmatprep.subr.mxu0 %v2690
    %v2692 = vand.u32 %v1149, 4294901760
    %2693 = vmatpush1.msra.mxu0 %v2692
    %v2694 = vand.u32 %v1167, 4294901760
    %2695 = vmatprep.subr.mxu0 %v2694
    %v2696 = vand.u32 %v1164, 4294901760
    %2697 = vmatpush1.msra.mxu0 %v2696
    %2698 = vmatprep.subr.mxu0 0.0
    %2699 = vmatpush1.msra.mxu0 0.0
    %2700 = vmatprep.subr.mxu0 0.0
    %2701 = vmatpush1.msra.mxu0 0.0
    %2702 = vmatprep.subr.mxu0 0.0
    %2703 = vmatpush1.msra.mxu0 0.0
    %2704 = vmatprep.subr.mxu0 0.0
    %2705 = vmatpush1.msra.mxu0 0.0
    %2706 = vmatprep.subr.mxu0 0.0
    %2707 = vmatpush1.msra.mxu0 0.0
    %2708 = vmatprep.subr.mxu0 0.0
    %2709 = vmatpush1.msra.mxu0 0.0
    %2710 = vmatprep.subr.mxu0 0.0
    %2711 = vmatpush1.msra.mxu0 0.0
    %2712 = vmatprep.subr.mxu0 0.0
    %2713 = vmatpush1.msra.mxu0 0.0
    %2714 = vmatprep.subr.mxu0 0.0
    %2715 = vmatpush1.msra.mxu0 0.0
    %2716 = vmatprep.subr.mxu0 0.0
    %2717 = vmatpush1.msra.mxu0 0.0
    %2718 = vmatprep.subr.mxu0 0.0
    %2719 = vmatpush1.msra.mxu0 0.0
    %2720 = vmatprep.subr.mxu0 0.0
    %2721 = vmatpush1.msra.mxu0 0.0
    %2722 = vmatprep.subr.mxu0 0.0
    %2723 = vmatpush1.msra.mxu0 0.0
    %2724 = vmatprep.subr.mxu0 0.0
    %2725 = vmatpush1.msra.mxu0 0.0
    %2726 = vmatprep.subr.mxu0 0.0
    %2727 = vmatpush1.msra.mxu0 0.0
    %2728 = vmatprep.subr.mxu0 0.0
    %2729 = vmatpush1.msra.mxu0 0.0
    %2730 = vmatprep.subr.mxu0 0.0
    %2731 = vmatpush1.msra.mxu0 0.0
    %2732 = vmatprep.subr.mxu0 0.0
    %2733 = vmatpush1.msra.mxu0 0.0
    %2734 = vmatprep.subr.mxu0 0.0
    %2735 = vmatpush1.msra.mxu0 0.0
    %2736 = vmatprep.subr.mxu0 0.0
    %2737 = vmatpush1.msra.mxu0 0.0
    %2738 = vmatprep.subr.mxu0 0.0
    %2739 = vmatpush1.msra.mxu0 0.0
    %2740 = vmatprep.subr.mxu0 0.0
    %2741 = vmatpush1.msra.mxu0 0.0
    %2742 = vmatprep.subr.mxu0 0.0
    %2743 = vmatpush1.msra.mxu0 0.0
    %2744 = vmatprep.subr.mxu0 0.0
    %2745 = vmatpush1.msra.mxu0 0.0
    %2746 = vmatprep.subr.mxu0 0.0
    %2747 = vmatpush1.msra.mxu0 0.0
    %2748 = vmatprep.subr.mxu0 0.0
    %2749 = vmatpush1.msra.mxu0 0.0
    %2750 = vmatprep.subr.mxu0 0.0
    %2751 = vmatpush1.msra.mxu0 0.0
    %2752 = vmatprep.subr.mxu0 0.0
    %2753 = vmatpush1.msra.mxu0 0.0
    %2754 = vmatprep.subr.mxu0 0.0
    %2755 = vmatpush1.msra.mxu0 0.0
    %2756 = vmatprep.subr.mxu0 0.0
    %2757 = vmatpush1.msra.mxu0 0.0
    %2758 = vmatprep.mubr.f32.mxu0 0.0
    %v2759 = vand.u32 %v2273, 4294901760
    %2760 = vmatmul.mubr.f32.gmra.mrb[0].mxu0 %v2759
    %v2761 = vpop.f32.mrb[0].mxu0
    %v2762 = vadd.f32 %v2686, %v2761
    %v2763 = vpop.f32.mrb[0].mxu0
    %v2764 = vadd.f32 %v2688, %v2763
    %2765 = vdwg.mxu0
    %v2766 = vsel %vm1660, %v2762, -inf
    %v2767 = vrot.slane %v2766, 4
    %v2768 = vmax.f32 %v2766, %v2767
    %v2769 = vrot.slane %v2768, 2
    %v2770 = vmax.f32 %v2768, %v2769
    %v2771 = vrot.slane %v2770, 1
    %v2772 = vmax.f32 %v2770, %v2771
    %v2773 = vsel %vm1660, %v2764, -inf
    %v2774 = vrot.slane %v2773, 4
    %v2775 = vmax.f32 %v2773, %v2774
    %v2776 = vrot.slane %v2775, 2
    %v2777 = vmax.f32 %v2775, %v2776
    %v2778 = vrot.slane %v2777, 1
    %v2779 = vmax.f32 %v2777, %v2778
    %v2780 = vsub.f32 %v2762, %v2772
    %v2781 = vsub.f32 %v2764, %v2779
    %v2782 = vmul.f32 %v2780, 1.442695
    %v2783 = vpow.pop %v2782
    %v2784 = vmul.f32 %v2781, 1.442695
    %v2785 = vpow.pop %v2784
    %v2786 = vsel %vm1660, %v2783, 0.0
    %v2787 = vrot.slane %v2786, 4
    %v2788 = vadd.f32 %v2786, %v2787
    %v2789 = vrot.slane %v2788, 2
    %v2790 = vadd.f32 %v2788, %v2789
    %v2791 = vrot.slane %v2790, 1
    %v2792 = vadd.f32 %v2790, %v2791
    %v2793 = vsel %vm1660, %v2785, 0.0
    %v2794 = vrot.slane %v2793, 4
    %v2795 = vadd.f32 %v2793, %v2794
    %v2796 = vrot.slane %v2795, 2
    %v2797 = vadd.f32 %v2795, %v2796
    %v2798 = vrot.slane %v2797, 1
    %v2799 = vadd.f32 %v2797, %v2798
    %v2800 = vrcp.pop %v2792
    %v2801 = vrcp.pop %v2799
    %v2802 = vmul.f32 %v2792, %v2800
    %v2803 = vmul.f32 %v2799, %v2801
    %v2804 = vsub.f32 2.0, %v2802
    %v2805 = vsub.f32 2.0, %v2803
    %v2806 = vmul.f32 %v2800, %v2804
    %v2807 = vmul.f32 %v2801, %v2805
    %v2808 = vmul.f32 %v2783, %v2806
    %v2809 = vmul.f32 %v2785, %v2807
    %v2812 = vcombine.low %v2808, %v2809
    %s2814 = scalar_lea.vmem [#allocation2], 16
    %2815 = vst [vmem:[%s2814] sm:$0x77] %v2812
    // Predicated region
    $region30: #{tpu_custom_call.1} parent=1 // pred_check
      _
    $region31: #{tpu_custom_call.1} parent=1 // pred_check_branch
      %2817 = sbr.rel (0) target = $region33
    $region32: #{tpu_custom_call.1} parent=1 // pred_region
      %s2819 = ssub.s32 384, 384
      %2820 = vsyncadd [#allocation3], %s2819
      %s2821 = sshll.u32 [#allocation2], 4
      %s2822 = int_to_ptr.vmem [resolvable:$true] %s2821
      %2827 = dma.vmem_to_hbm [thread:$0]  %s2822, 384, %s7, [#allocation3], 128, 128, 8
    $region33: #{tpu_custom_call.1} parent=1 // pred_fallthru
      _
    // Predicated region
    $region34: #{tpu_custom_call.1} parent=1 // pred_check
      _
    $region35: #{tpu_custom_call.1} parent=1 // pred_check_branch
      %2829 = sbr.rel (0) target = $region37
    $region36: #{tpu_custom_call.1} parent=1 // pred_region
      %2830 = dma.done [#allocation3], 384
    $region37: #{tpu_custom_call.1} parent=1 // pred_fallthru
      _
    %2831 = vsyncpa [#allocation3], 1

</llo_original>
